<compile_context>
chip_gen: v5e
topology: v5e:2x2
jax: 0.10.0
libtpu: 0.0.40
codegen_flags: <defaults>
</compile_context>

<pallas_src>
import math
import functools

import jax
import jax.numpy as jnp
from jax.experimental import pallas as pl
from jax.experimental.pallas import tpu as pltpu


# ----------------------------------------------------------------------------
# Pallas kernel: CrossAttentionLayer.forward_post for one batch tile (bt items)
# ----------------------------------------------------------------------------
def _cross_attn_kernel(tgt_ref, qpos_ref, mem_ref, pos_ref,
                       wq_ref, wk_ref, wv_ref,
                       bq_ref, bk_ref, bv_ref,
                       wo_ref, bo_ref, gamma_ref, beta_ref,
                       out_ref, attn_ref, ctx_ref,
                       *, nhead, head_dim, eps):
    bt, L, D = out_ref.shape
    S = mem_ref.shape[-2]
    Sp = attn_ref.shape[-1]
    hd = head_dim
    bf16, f32 = jnp.bfloat16, jnp.float32

    # tgt / qpos / pos may be (X, D) batch-invariant or (bt, X, D) batched.
    tgt = tgt_ref[...]
    q_in = tgt + qpos_ref[...]            # with_pos_embed(tgt, query_pos)
    mem = mem_ref[...]
    k_in = mem + pos_ref[...]             # with_pos_embed(memory, pos)

    def project(x, w_ref, b_ref):
        # flatten leading dims -> one wide MXU matmul (bf16 in, f32 acc).
        lead = x.shape[:-1]
        x2 = x.reshape(-1, D).astype(bf16)
        y = jnp.dot(x2, w_ref[...], preferred_element_type=f32) + b_ref[...]
        return y.reshape(lead + (D,))

    q = project(q_in, wq_ref, bq_ref)     # 1/sqrt(hd) already folded into wq/bq
    k = project(k_in, wk_ref, bk_ref)
    v = project(mem, wv_ref, bv_ref)

    if q.ndim == 2:
        q = jnp.broadcast_to(q[None], (bt, L, D))
    if k.ndim == 2:
        k = jnp.broadcast_to(k[None], (bt, S, D))
    if v.ndim == 2:
        v = jnp.broadcast_to(v[None], (bt, S, D))

    # Stack heads along the leading (batch) axis: ONE single-batch-dim
    # dot_general per phase covers all heads and the whole batch tile.
    def split_heads(x):                   # (bt, N, D) f32 -> (nhead*bt, N, hd) bf16
        return jnp.concatenate(
            [x[:, :, h * hd:(h + 1) * hd].astype(bf16) for h in range(nhead)],
            axis=0)

    qh = split_heads(q)                   # (nhead*bt, L, hd)
    kh = split_heads(k)                   # (nhead*bt, S, hd)
    vh = split_heads(v)                   # (nhead*bt, S, hd)

    s = jnp.einsum('bld,bsd->bls', qh, kh, preferred_element_type=f32)
    s = s - jnp.max(s, axis=-1, keepdims=True)
    e = jnp.exp(s)
    p = e * (1.0 / jnp.sum(e, axis=-1, keepdims=True))   # exact softmax

    # Head-averaged attention map (MultiheadAttention default), lane-padded to
    # Sp (multiple of 128) so the output stores are dense (no vst.msk).
    attn_mean = jnp.sum(p.reshape(nhead, bt, L, S), axis=0) * (1.0 / nhead)
    if Sp > S:
        attn_mean = jnp.concatenate(
            [attn_mean, jnp.zeros((bt, L, Sp - S), f32)], axis=-1)
    attn_ref[...] = attn_mean.astype(attn_ref.dtype)

    # Per-head context -> VMEM slab, then a single K=D output projection.
    ctx = jnp.einsum('bls,bsd->bld', p.astype(bf16), vh,
                     preferred_element_type=f32)          # (nhead*bt, L, hd)
    for h in range(nhead):
        ctx_ref[:, :, h * hd:(h + 1) * hd] = ctx[h * bt:(h + 1) * bt]
    ctx_all = ctx_ref[...].reshape(bt * L, D).astype(bf16)
    attn_out = (jnp.dot(ctx_all, wo_ref[...], preferred_element_type=f32)
                + bo_ref[...]).reshape(bt, L, D)

    # residual + dropout(identity) + LayerNorm  (forward_post), all in f32.
    x = tgt + attn_out                    # tgt broadcasts if batch-invariant
    mean = jnp.mean(x, axis=-1, keepdims=True)
    xc = x - mean
    var = jnp.mean(xc * xc, axis=-1, keepdims=True)
    y = xc * jax.lax.rsqrt(var + eps)
    y = y * gamma_ref[...] + beta_ref[...]
    out_ref[...] = y.astype(out_ref.dtype)


# ----------------------------------------------------------------------------
# VMEM-aware batch-tile selection
# ----------------------------------------------------------------------------
def _tpu_vmem_capacity_bytes():
    try:
        return int(pltpu.get_tpu_info().vmem_capacity_bytes)
    except Exception:
        return 64 * 1024 * 1024            # conservative fallback (v7x per-TC)


def _per_step_vmem_bytes(bt, L, S, Sp, D, nhead, batched):
    f32, bf16 = 4, 2
    tgt_b, qpos_b, mem_b, pos_b = batched
    rows = lambda is_b, n: (bt if is_b else 1) * n
    seq_in = (rows(tgt_b, L) + rows(qpos_b, L)
              + rows(mem_b, S) + rows(pos_b, S)) * D * f32
    weights = 4 * D * D * bf16 + 6 * D * f32
    outs = bt * L * (D + Sp) * f32
    dbuf = 2 * (seq_in + weights + outs)         # double-buffered pipeline blocks
    scratch = bt * L * D * f32                   # ctx slab
    qkv = (bt * L * D + 2 * bt * S * D) * (f32 + bf16)   # q/k/v f32 + head stacks
    probs = nhead * bt * L * S * (3 * f32 + bf16)        # s / e / p (+ bf16 p)
    misc = bt * L * Sp * f32 + 4 * bt * L * D * f32      # attn mean, LN temps
    return dbuf + scratch + qkv + probs + misc


def _pick_batch_tile(B, L, S, Sp, D, nhead, batched, vmem_cap):
    budget = int(0.45 * vmem_cap)
    # Keep grid >= 2: shards the 'parallel' axis across v7x's two TensorCores
    # and lets the pipeline overlap input DMA with compute on all generations.
    bt = B // 2 if B >= 2 else B
    while bt > 1 and (B % bt != 0 or
                      _per_step_vmem_bytes(bt, L, S, Sp, D, nhead, batched) > budget):
        bt -= 1
    return max(bt, 1)


# ----------------------------------------------------------------------------
# Wrapper: CrossAttentionLayer (normalize_before=False, eval mode)
# ----------------------------------------------------------------------------
def cross_attention_layer(prep, tgt, memory, pos, query_pos, *, nhead, eps=1e-5):
    """tgt/query_pos: (L, B, D) batched or (L, D) batch-invariant.
       memory/pos:    (S, B, D) batched or (S, D) batch-invariant.
       Returns (out (L, B, D), attn (B, L, S))."""
    seqs = (tgt, query_pos, memory, pos)
    D = tgt.shape[-1]
    L = tgt.shape[0]
    S = memory.shape[0]
    B = None
    for a in seqs:
        if a.ndim == 3:
            B = a.shape[1]
            break
    assert B is not None, "at least one sequence input must be batched"
    head_dim = D // nhead
    Sp = ((S + 127) // 128) * 128          # lane-dense attn output block
    batched = tuple(a.ndim == 3 for a in seqs)
    vmem_cap = _tpu_vmem_capacity_bytes()
    bt = _pick_batch_tile(B, L, S, Sp, D, nhead, batched, vmem_cap)
    per_step = _per_step_vmem_bytes(bt, L, S, Sp, D, nhead, batched)
    vmem_limit = int(min(0.9 * vmem_cap, max(32 * 1024 * 1024, 2 * per_step)))

    # batch-major layout for batched tensors; batch-invariant ones stay 2-D.
    def to_kernel_layout(a):
        return a if a.ndim == 2 else jnp.transpose(a, (1, 0, 2))

    tgt_k, qpos_k, mem_k, pos_k = (to_kernel_layout(a) for a in seqs)

    def seq_spec(a, length):
        if a.ndim == 2:
            return pl.BlockSpec((length, D), lambda b: (0, 0))
        return pl.BlockSpec((bt, length, D), lambda b: (b, 0, 0))

    const = lambda shape: pl.BlockSpec(shape, lambda b: (0, 0))

    kernel = functools.partial(_cross_attn_kernel, nhead=nhead,
                               head_dim=head_dim, eps=eps)

    out_b, attn_pad = pl.pallas_call(
        kernel,
        grid=(B // bt,),
        in_specs=[
            seq_spec(tgt_k, L), seq_spec(qpos_k, L),
            seq_spec(mem_k, S), seq_spec(pos_k, S),
            const((D, D)), const((D, D)), const((D, D)),
            const((1, D)), const((1, D)), const((1, D)),
            const((D, D)), const((1, D)),
            const((1, D)), const((1, D)),
        ],
        out_specs=[
            pl.BlockSpec((bt, L, D), lambda b: (b, 0, 0)),
            pl.BlockSpec((bt, L, Sp), lambda b: (b, 0, 0)),
        ],
        out_shape=[
            jax.ShapeDtypeStruct((B, L, D), jnp.float32),
            jax.ShapeDtypeStruct((B, L, Sp), jnp.float32),
        ],
        scratch_shapes=[pltpu.VMEM((bt, L, D), jnp.float32)],
        compiler_params=pltpu.CompilerParams(
            dimension_semantics=("parallel",),
            vmem_limit_bytes=vmem_limit),
    )(tgt_k, qpos_k, mem_k, pos_k,
      prep["wq_t"], prep["wk_t"], prep["wv_t"],
      prep["bq"], prep["bk"], prep["bv"],
      prep["wo_t"], prep["bo"], prep["gamma"], prep["beta"])

    attn = attn_pad if Sp == S else attn_pad[:, :, :S]
    return jnp.transpose(out_b, (1, 0, 2)), attn


# ----------------------------------------------------------------------------
# Parameters (deterministic synthetic weights) + one-time kernel preparation
# ----------------------------------------------------------------------------
def init_cross_attn_params(key, d_model):
    k1, k2, k3, k4 = jax.random.split(key, 4)
    s = 1.0 / math.sqrt(d_model)
    return {
        "in_proj_weight": jax.random.uniform(k1, (3 * d_model, d_model),
                                             jnp.float32, -s, s),
        "in_proj_bias": jax.random.uniform(k2, (3 * d_model,), jnp.float32, -s, s),
        "out_proj_weight": jax.random.uniform(k3, (d_model, d_model),
                                              jnp.float32, -s, s),
        "out_proj_bias": jax.random.uniform(k4, (d_model,), jnp.float32, -s, s),
        "ln_weight": jnp.ones((d_model,), jnp.float32),
        "ln_bias": jnp.zeros((d_model,), jnp.float32),
    }


def _prepare_attn_params(params, nhead, compute_dtype=jnp.bfloat16):
    """Pre-transpose weights (no in-kernel .T), pre-cast MXU operands to bf16,
    and fold the 1/sqrt(head_dim) query scale into wq/bq (one-time fold)."""
    d_model = params["out_proj_weight"].shape[0]
    scale = 1.0 / math.sqrt(d_model // nhead)
    wq, wk, wv = jnp.split(params["in_proj_weight"], 3, axis=0)
    bq, bk, bv = jnp.split(params["in_proj_bias"], 3, axis=0)
    row = lambda a: a.reshape(1, -1).astype(jnp.float32)
    t = lambda w: jnp.asarray(w.T, dtype=compute_dtype)
    return {
        "wq_t": jnp.asarray((wq * scale).T, dtype=compute_dtype),
        "wk_t": t(wk), "wv_t": t(wv),
        "bq": row(bq * scale), "bk": row(bk), "bv": row(bv),
        "wo_t": t(params["out_proj_weight"]),
        "bo": row(params["out_proj_bias"]),
        "gamma": row(params["ln_weight"]),
        "beta": row(params["ln_bias"]),
    }


class RelationProjectLayerPallas:
    def __init__(self, d_model, nhead=8, num_obj_query=100, num_hidden_rel=100,
                 key=jax.random.PRNGKey(0)):
        self.d_model = d_model
        self.nhead = nhead
        self.num_obj_query = num_obj_query
        self.num_hidden_rel = num_hidden_rel
        k0, k1, k2, k3 = jax.random.split(key, 4)
        self.rel_hidden_queries = jax.random.normal(
            k0, (num_hidden_rel, d_model), jnp.float32)
        self.rel_hidden_pos = jax.random.normal(
            k1, (num_hidden_rel, d_model), jnp.float32)
        self.input_to_hidden = _prepare_attn_params(
            init_cross_attn_params(k2, d_model), nhead)
        self.hidden_to_input = _prepare_attn_params(
            init_cross_attn_params(k3, d_model), nhead)

    def _split(self, t):
        return t[:self.num_obj_query, :], t[self.num_obj_query:, :]

    def forward_project(self, graph_queries, query_pos):
        obj_q, rel_q = self._split(graph_queries)
        obj_qp, rel_qp = self._split(query_pos)
        b = graph_queries.shape[1]
        # hidden queries / pos go into the kernel as raw (L, D) parameters —
        # no per-batch broadcast_to materialization.
        hid_out, attn = cross_attention_layer(
            self.input_to_hidden,
            tgt=self.rel_hidden_queries, memory=rel_q,
            pos=rel_qp, query_pos=self.rel_hidden_pos, nhead=self.nhead)
        queries = jnp.concatenate((obj_q, hid_out), axis=0)
        hid_p_b = jnp.broadcast_to(self.rel_hidden_pos[:, None, :],
                                   (self.num_hidden_rel, b, self.d_model))
        new_query_pos = jnp.concatenate((obj_qp, hid_p_b), axis=0)
        return queries, new_query_pos, attn

    def forward_reproject(self, original_queries, original_query_pos,
                          graph_node_features):
        obj_q, rel_q = self._split(original_queries)
        obj_qp, rel_qp = self._split(original_query_pos)
        obj_feat, hid_feat = self._split(graph_node_features)
        rel_feat, attn = cross_attention_layer(
            self.hidden_to_input,
            tgt=rel_q, memory=hid_feat,
            pos=self.rel_hidden_pos, query_pos=rel_qp, nhead=self.nhead)
        # outer residual from the reference (in addition to the in-layer one).
        rel_feat = rel_q + rel_feat
        out = jnp.concatenate((obj_feat, rel_feat), axis=0)
        return out, attn

    def __call__(self, is_project, *args):
        if is_project:
            return self.forward_project(*args)
        return self.forward_reproject(*args)


if __name__ == "__main__":
    d_model = 32
    nhead = 4
    num_obj_query = 8
    num_rel_query = 8
    num_hidden_rel = 8
    B = 2

    key = jax.random.PRNGKey(0)
    k_layer, k_q, k_p = jax.random.split(key, 3)

    layer = RelationProjectLayerPallas(
        d_model, nhead=nhead, num_obj_query=num_obj_query,
        num_hidden_rel=num_hidden_rel, key=k_layer)

    graph_queries = jax.random.normal(
        k_q, (num_obj_query + num_rel_query, B, d_model), jnp.float32)
    query_pos = jax.random.normal(
        k_p, (num_obj_query + num_rel_query, B, d_model), jnp.float32)

    # project: rel queries -> hidden rel queries
    queries, new_query_pos, attn_p = layer(True, graph_queries, query_pos)
    jax.block_until_ready((queries, new_query_pos, attn_p))
    assert queries.shape == (num_obj_query + num_hidden_rel, B, d_model)
    assert new_query_pos.shape == (num_obj_query + num_hidden_rel, B, d_model)
    assert attn_p.shape == (B, num_hidden_rel, num_rel_query)
    assert bool(jnp.all(jnp.isfinite(queries)))
    assert bool(jnp.all(jnp.isfinite(attn_p)))

    # reproject: hidden rel node features -> original rel query slots
    graph_node_features = queries
    node_feats, attn_r = layer(False, graph_queries, query_pos,
                               graph_node_features)
    jax.block_until_ready((node_feats, attn_r))
    assert node_feats.shape == (num_obj_query + num_rel_query, B, d_model)
    assert attn_r.shape == (B, num_rel_query, num_hidden_rel)
    assert bool(jnp.all(jnp.isfinite(node_feats)))
    assert bool(jnp.all(jnp.isfinite(attn_r)))

    print("KERNEL_OK")
</pallas_src>

<mosaic_0001>
module attributes {stable_mosaic.version = 11 : i64} {
  func.func @_cross_attn_kernel(%arg0: i32, %arg1: memref<8x32xf32, #tpu.memory_space<vmem>>, %arg2: memref<8x32xf32, #tpu.memory_space<vmem>>, %arg3: memref<1x8x32xf32, #tpu.memory_space<vmem>>, %arg4: memref<1x8x32xf32, #tpu.memory_space<vmem>>, %arg5: memref<32x32xbf16, #tpu.memory_space<vmem>>, %arg6: memref<32x32xbf16, #tpu.memory_space<vmem>>, %arg7: memref<32x32xbf16, #tpu.memory_space<vmem>>, %arg8: memref<1x32xf32, #tpu.memory_space<vmem>>, %arg9: memref<1x32xf32, #tpu.memory_space<vmem>>, %arg10: memref<1x32xf32, #tpu.memory_space<vmem>>, %arg11: memref<32x32xbf16, #tpu.memory_space<vmem>>, %arg12: memref<1x32xf32, #tpu.memory_space<vmem>>, %arg13: memref<1x32xf32, #tpu.memory_space<vmem>>, %arg14: memref<1x32xf32, #tpu.memory_space<vmem>>, %arg15: memref<1x8x32xf32, #tpu.memory_space<vmem>>, %arg16: memref<1x8x128xf32, #tpu.memory_space<vmem>>, %arg17: memref<1x8x32xf32, #tpu.memory_space<vmem>>) attributes {dimension_semantics = [#tpu.dimension_semantics<parallel>], iteration_bounds = array<i64: 2>, scalar_prefetch = 0 : i64, scratch_operands = 1 : i64, tpu.core_type = #tpu.core_type<tc>, window_params = [{pipeline_mode = #tpu.pipeline_mode<synchronous>, transform_indices = @transform_0, window_bounds = array<i64: 8, 32>}, {pipeline_mode = #tpu.pipeline_mode<synchronous>, transform_indices = @transform_1, window_bounds = array<i64: 8, 32>}, {transform_indices = @transform_2, window_bounds = array<i64: 1, 8, 32>}, {transform_indices = @transform_3, window_bounds = array<i64: 1, 8, 32>}, {pipeline_mode = #tpu.pipeline_mode<synchronous>, transform_indices = @transform_4, window_bounds = array<i64: 32, 32>}, {pipeline_mode = #tpu.pipeline_mode<synchronous>, transform_indices = @transform_5, window_bounds = array<i64: 32, 32>}, {pipeline_mode = #tpu.pipeline_mode<synchronous>, transform_indices = @transform_6, window_bounds = array<i64: 32, 32>}, {pipeline_mode = #tpu.pipeline_mode<synchronous>, transform_indices = @transform_7, window_bounds = array<i64: 1, 32>}, {pipeline_mode = #tpu.pipeline_mode<synchronous>, transform_indices = @transform_8, window_bounds = array<i64: 1, 32>}, {pipeline_mode = #tpu.pipeline_mode<synchronous>, transform_indices = @transform_9, window_bounds = array<i64: 1, 32>}, {pipeline_mode = #tpu.pipeline_mode<synchronous>, transform_indices = @transform_10, window_bounds = array<i64: 32, 32>}, {pipeline_mode = #tpu.pipeline_mode<synchronous>, transform_indices = @transform_11, window_bounds = array<i64: 1, 32>}, {pipeline_mode = #tpu.pipeline_mode<synchronous>, transform_indices = @transform_12, window_bounds = array<i64: 1, 32>}, {pipeline_mode = #tpu.pipeline_mode<synchronous>, transform_indices = @transform_13, window_bounds = array<i64: 1, 32>}, {transform_indices = @transform_14, window_bounds = array<i64: 1, 8, 32>}, {transform_indices = @transform_15, window_bounds = array<i64: 1, 8, 128>}]} {
    %c0 = arith.constant 0 : index
    %c0_0 = arith.constant 0 : index
    %0 = vector.load %arg1[%c0, %c0_0] : memref<8x32xf32, #tpu.memory_space<vmem>>, vector<8x32xf32>
    %c0_1 = arith.constant 0 : index
    %c0_2 = arith.constant 0 : index
    %1 = vector.load %arg2[%c0_1, %c0_2] : memref<8x32xf32, #tpu.memory_space<vmem>>, vector<8x32xf32>
    %2 = arith.addf %0, %1 : vector<8x32xf32>
    %c0_3 = arith.constant 0 : index
    %c0_4 = arith.constant 0 : index
    %c0_5 = arith.constant 0 : index
    %3 = vector.load %arg3[%c0_3, %c0_4, %c0_5] : memref<1x8x32xf32, #tpu.memory_space<vmem>>, vector<1x8x32xf32>
    %c0_6 = arith.constant 0 : index
    %c0_7 = arith.constant 0 : index
    %c0_8 = arith.constant 0 : index
    %4 = vector.load %arg4[%c0_6, %c0_7, %c0_8] : memref<1x8x32xf32, #tpu.memory_space<vmem>>, vector<1x8x32xf32>
    %5 = arith.addf %3, %4 : vector<1x8x32xf32>
    %6 = arith.truncf %2 : vector<8x32xf32> to vector<8x32xbf16>
    %c0_9 = arith.constant 0 : index
    %c0_10 = arith.constant 0 : index
    %7 = vector.load %arg5[%c0_9, %c0_10] : memref<32x32xbf16, #tpu.memory_space<vmem>>, vector<32x32xbf16>
    %cst = arith.constant dense<0.000000e+00> : vector<8x32xf32>
    %8 = tpu.matmul %6, %7, %cst {dimension_numbers = #tpu.dot_dimension_numbers<[1], [0], [0], [1], [0, 0, 1, 1], [], []>} : vector<8x32xbf16>, vector<32x32xbf16>, vector<8x32xf32> -> vector<8x32xf32>
    %c0_11 = arith.constant 0 : index
    %c0_12 = arith.constant 0 : index
    %9 = vector.load %arg8[%c0_11, %c0_12] : memref<1x32xf32, #tpu.memory_space<vmem>>, vector<1x32xf32>
    %10 = vector.broadcast %9 : vector<1x32xf32> to vector<8x32xf32>
    %11 = arith.addf %8, %10 : vector<8x32xf32>
    %12 = vector.shape_cast %5 : vector<1x8x32xf32> to vector<8x32xf32>
    %13 = arith.truncf %12 : vector<8x32xf32> to vector<8x32xbf16>
    %c0_13 = arith.constant 0 : index
    %c0_14 = arith.constant 0 : index
    %14 = vector.load %arg6[%c0_13, %c0_14] : memref<32x32xbf16, #tpu.memory_space<vmem>>, vector<32x32xbf16>
    %cst_15 = arith.constant dense<0.000000e+00> : vector<8x32xf32>
    %15 = tpu.matmul %13, %14, %cst_15 {dimension_numbers = #tpu.dot_dimension_numbers<[1], [0], [0], [1], [0, 0, 1, 1], [], []>} : vector<8x32xbf16>, vector<32x32xbf16>, vector<8x32xf32> -> vector<8x32xf32>
    %c0_16 = arith.constant 0 : index
    %c0_17 = arith.constant 0 : index
    %16 = vector.load %arg9[%c0_16, %c0_17] : memref<1x32xf32, #tpu.memory_space<vmem>>, vector<1x32xf32>
    %17 = vector.broadcast %16 : vector<1x32xf32> to vector<8x32xf32>
    %18 = arith.addf %15, %17 : vector<8x32xf32>
    %19 = vector.shape_cast %18 : vector<8x32xf32> to vector<1x8x32xf32>
    %20 = vector.shape_cast %3 : vector<1x8x32xf32> to vector<8x32xf32>
    %21 = arith.truncf %20 : vector<8x32xf32> to vector<8x32xbf16>
    %c0_18 = arith.constant 0 : index
    %c0_19 = arith.constant 0 : index
    %22 = vector.load %arg7[%c0_18, %c0_19] : memref<32x32xbf16, #tpu.memory_space<vmem>>, vector<32x32xbf16>
    %cst_20 = arith.constant dense<0.000000e+00> : vector<8x32xf32>
    %23 = tpu.matmul %21, %22, %cst_20 {dimension_numbers = #tpu.dot_dimension_numbers<[1], [0], [0], [1], [0, 0, 1, 1], [], []>} : vector<8x32xbf16>, vector<32x32xbf16>, vector<8x32xf32> -> vector<8x32xf32>
    %c0_21 = arith.constant 0 : index
    %c0_22 = arith.constant 0 : index
    %24 = vector.load %arg10[%c0_21, %c0_22] : memref<1x32xf32, #tpu.memory_space<vmem>>, vector<1x32xf32>
    %25 = vector.broadcast %24 : vector<1x32xf32> to vector<8x32xf32>
    %26 = arith.addf %23, %25 : vector<8x32xf32>
    %27 = vector.shape_cast %26 : vector<8x32xf32> to vector<1x8x32xf32>
    %28 = vector.shape_cast %11 : vector<8x32xf32> to vector<1x8x32xf32>
    %29 = vector.extract_strided_slice %28 {offsets = [0, 0, 0], sizes = [1, 8, 8], strides = [1, 1, 1]} : vector<1x8x32xf32> to vector<1x8x8xf32>
    %30 = arith.truncf %29 : vector<1x8x8xf32> to vector<1x8x8xbf16>
    %31 = vector.extract_strided_slice %28 {offsets = [0, 0, 8], sizes = [1, 8, 8], strides = [1, 1, 1]} : vector<1x8x32xf32> to vector<1x8x8xf32>
    %32 = arith.truncf %31 : vector<1x8x8xf32> to vector<1x8x8xbf16>
    %33 = vector.extract_strided_slice %28 {offsets = [0, 0, 16], sizes = [1, 8, 8], strides = [1, 1, 1]} : vector<1x8x32xf32> to vector<1x8x8xf32>
    %34 = arith.truncf %33 : vector<1x8x8xf32> to vector<1x8x8xbf16>
    %35 = vector.extract_strided_slice %28 {offsets = [0, 0, 24], sizes = [1, 8, 8], strides = [1, 1, 1]} : vector<1x8x32xf32> to vector<1x8x8xf32>
    %36 = arith.truncf %35 : vector<1x8x8xf32> to vector<1x8x8xbf16>
    %37 = tpu.concatenate %30, %32, %34, %36 in 0 : vector<1x8x8xbf16>, vector<1x8x8xbf16>, vector<1x8x8xbf16>, vector<1x8x8xbf16> -> vector<4x8x8xbf16>
    %38 = vector.extract_strided_slice %19 {offsets = [0, 0, 0], sizes = [1, 8, 8], strides = [1, 1, 1]} : vector<1x8x32xf32> to vector<1x8x8xf32>
    %39 = arith.truncf %38 : vector<1x8x8xf32> to vector<1x8x8xbf16>
    %40 = vector.extract_strided_slice %19 {offsets = [0, 0, 8], sizes = [1, 8, 8], strides = [1, 1, 1]} : vector<1x8x32xf32> to vector<1x8x8xf32>
    %41 = arith.truncf %40 : vector<1x8x8xf32> to vector<1x8x8xbf16>
    %42 = vector.extract_strided_slice %19 {offsets = [0, 0, 16], sizes = [1, 8, 8], strides = [1, 1, 1]} : vector<1x8x32xf32> to vector<1x8x8xf32>
    %43 = arith.truncf %42 : vector<1x8x8xf32> to vector<1x8x8xbf16>
    %44 = vector.extract_strided_slice %19 {offsets = [0, 0, 24], sizes = [1, 8, 8], strides = [1, 1, 1]} : vector<1x8x32xf32> to vector<1x8x8xf32>
    %45 = arith.truncf %44 : vector<1x8x8xf32> to vector<1x8x8xbf16>
    %46 = tpu.concatenate %39, %41, %43, %45 in 0 : vector<1x8x8xbf16>, vector<1x8x8xbf16>, vector<1x8x8xbf16>, vector<1x8x8xbf16> -> vector<4x8x8xbf16>
    %47 = vector.extract_strided_slice %27 {offsets = [0, 0, 0], sizes = [1, 8, 8], strides = [1, 1, 1]} : vector<1x8x32xf32> to vector<1x8x8xf32>
    %48 = arith.truncf %47 : vector<1x8x8xf32> to vector<1x8x8xbf16>
    %49 = vector.extract_strided_slice %27 {offsets = [0, 0, 8], sizes = [1, 8, 8], strides = [1, 1, 1]} : vector<1x8x32xf32> to vector<1x8x8xf32>
    %50 = arith.truncf %49 : vector<1x8x8xf32> to vector<1x8x8xbf16>
    %51 = vector.extract_strided_slice %27 {offsets = [0, 0, 16], sizes = [1, 8, 8], strides = [1, 1, 1]} : vector<1x8x32xf32> to vector<1x8x8xf32>
    %52 = arith.truncf %51 : vector<1x8x8xf32> to vector<1x8x8xbf16>
    %53 = vector.extract_strided_slice %27 {offsets = [0, 0, 24], sizes = [1, 8, 8], strides = [1, 1, 1]} : vector<1x8x32xf32> to vector<1x8x8xf32>
    %54 = arith.truncf %53 : vector<1x8x8xf32> to vector<1x8x8xbf16>
    %55 = tpu.concatenate %48, %50, %52, %54 in 0 : vector<1x8x8xbf16>, vector<1x8x8xbf16>, vector<1x8x8xbf16>, vector<1x8x8xbf16> -> vector<4x8x8xbf16>
    "tpu.trace_start"() <{level = 10 : i32, message = "bld,bsd->bls"}> : () -> ()
    %cst_23 = arith.constant dense<0.000000e+00> : vector<4x8x8xf32>
    %56 = tpu.matmul %37, %46, %cst_23 {dimension_numbers = #tpu.dot_dimension_numbers<[2], [2], [1], [1], [0, 0, 0, 1, 1, 1], [0], [0]>} : vector<4x8x8xbf16>, vector<4x8x8xbf16>, vector<4x8x8xf32> -> vector<4x8x8xf32>
    "tpu.trace_stop"() : () -> ()
    %cst_24 = arith.constant dense<0xFF800000> : vector<4x8xf32>
    %57 = vector.multi_reduction <maximumf>, %56, %cst_24 [2] : vector<4x8x8xf32> to vector<4x8xf32>
    %58 = vector.shape_cast %57 : vector<4x8xf32> to vector<4x8x1xf32>
    %59 = vector.broadcast %58 : vector<4x8x1xf32> to vector<4x8x8xf32>
    %60 = arith.subf %56, %59 : vector<4x8x8xf32>
    %61 = math.exp %60 : vector<4x8x8xf32>
    %cst_25 = arith.constant dense<0.000000e+00> : vector<4x8xf32>
    %62 = vector.multi_reduction <add>, %61, %cst_25 [2] : vector<4x8x8xf32> to vector<4x8xf32>
    %63 = vector.shape_cast %62 : vector<4x8xf32> to vector<4x8x1xf32>
    %cst_26 = arith.constant 1.000000e+00 : f32
    %64 = vector.broadcast %cst_26 : f32 to vector<4x8x1xf32>
    %65 = arith.divf %64, %63 : vector<4x8x1xf32>
    %66 = vector.broadcast %65 : vector<4x8x1xf32> to vector<4x8x8xf32>
    %67 = arith.mulf %61, %66 : vector<4x8x8xf32>
    %68 = vector.shape_cast %67 : vector<4x8x8xf32> to vector<4x1x8x8xf32>
    %cst_27 = arith.constant dense<0.000000e+00> : vector<1x8x8xf32>
    %69 = vector.multi_reduction <add>, %68, %cst_27 [0] : vector<4x1x8x8xf32> to vector<1x8x8xf32>
    %cst_28 = arith.constant 2.500000e-01 : f32
    %70 = vector.broadcast %cst_28 : f32 to vector<1x8x8xf32>
    %71 = arith.mulf %69, %70 : vector<1x8x8xf32>
    %cst_29 = arith.constant 0.000000e+00 : f32
    %72 = vector.broadcast %cst_29 : f32 to vector<1x8x120xf32>
    %73 = tpu.concatenate %71, %72 in 2 : vector<1x8x8xf32>, vector<1x8x120xf32> -> vector<1x8x128xf32>
    %c0_30 = arith.constant 0 : index
    %c0_31 = arith.constant 0 : index
    %c0_32 = arith.constant 0 : index
    %74 = vector.load %arg16[%c0_30, %c0_31, %c0_32] : memref<1x8x128xf32, #tpu.memory_space<vmem>>, vector<1x8x128xf32>
    tpu.vector_store %arg16[%c0_30, %c0_31, %c0_32], %73 {strides = array<i32>} : memref<1x8x128xf32, #tpu.memory_space<vmem>>, vector<1x8x128xf32>,
    %75 = arith.truncf %67 : vector<4x8x8xf32> to vector<4x8x8xbf16>
    "tpu.trace_start"() <{level = 10 : i32, message = "bls,bsd->bld"}> : () -> ()
    %cst_33 = arith.constant dense<0.000000e+00> : vector<4x8x8xf32>
    %76 = tpu.matmul %75, %55, %cst_33 {dimension_numbers = #tpu.dot_dimension_numbers<[2], [1], [1], [2], [0, 0, 0, 1, 1, 2], [0], [0]>} : vector<4x8x8xbf16>, vector<4x8x8xbf16>, vector<4x8x8xf32> -> vector<4x8x8xf32>
    "tpu.trace_stop"() : () -> ()
    %77 = vector.extract_strided_slice %76 {offsets = [0, 0, 0], sizes = [1, 8, 8], strides = [1, 1, 1]} : vector<4x8x8xf32> to vector<1x8x8xf32>
    %c0_34 = arith.constant 0 : index
    %c0_35 = arith.constant 0 : index
    %c0_36 = arith.constant 0 : index
    %78 = vector.load %arg17[%c0_34, %c0_35, %c0_36] : memref<1x8x32xf32, #tpu.memory_space<vmem>>, vector<1x8x8xf32>
    tpu.vector_store %arg17[%c0_34, %c0_35, %c0_36], %77 {strides = array<i32>} : memref<1x8x32xf32, #tpu.memory_space<vmem>>, vector<1x8x8xf32>,
    %79 = vector.extract_strided_slice %76 {offsets = [1, 0, 0], sizes = [1, 8, 8], strides = [1, 1, 1]} : vector<4x8x8xf32> to vector<1x8x8xf32>
    %c0_37 = arith.constant 0 : index
    %c0_38 = arith.constant 0 : index
    %c8 = arith.constant 8 : index
    %80 = vector.load %arg17[%c0_37, %c0_38, %c8] : memref<1x8x32xf32, #tpu.memory_space<vmem>>, vector<1x8x8xf32>
    tpu.vector_store %arg17[%c0_37, %c0_38, %c8], %79 {strides = array<i32>} : memref<1x8x32xf32, #tpu.memory_space<vmem>>, vector<1x8x8xf32>,
    %81 = vector.extract_strided_slice %76 {offsets = [2, 0, 0], sizes = [1, 8, 8], strides = [1, 1, 1]} : vector<4x8x8xf32> to vector<1x8x8xf32>
    %c0_39 = arith.constant 0 : index
    %c0_40 = arith.constant 0 : index
    %c16 = arith.constant 16 : index
    %82 = vector.load %arg17[%c0_39, %c0_40, %c16] : memref<1x8x32xf32, #tpu.memory_space<vmem>>, vector<1x8x8xf32>
    tpu.vector_store %arg17[%c0_39, %c0_40, %c16], %81 {strides = array<i32>} : memref<1x8x32xf32, #tpu.memory_space<vmem>>, vector<1x8x8xf32>,
    %83 = vector.extract_strided_slice %76 {offsets = [3, 0, 0], sizes = [1, 8, 8], strides = [1, 1, 1]} : vector<4x8x8xf32> to vector<1x8x8xf32>
    %c0_41 = arith.constant 0 : index
    %c0_42 = arith.constant 0 : index
    %c24 = arith.constant 24 : index
    %84 = vector.load %arg17[%c0_41, %c0_42, %c24] : memref<1x8x32xf32, #tpu.memory_space<vmem>>, vector<1x8x8xf32>
    tpu.vector_store %arg17[%c0_41, %c0_42, %c24], %83 {strides = array<i32>} : memref<1x8x32xf32, #tpu.memory_space<vmem>>, vector<1x8x8xf32>,
    %c0_43 = arith.constant 0 : index
    %c0_44 = arith.constant 0 : index
    %c0_45 = arith.constant 0 : index
    %85 = vector.load %arg17[%c0_43, %c0_44, %c0_45] : memref<1x8x32xf32, #tpu.memory_space<vmem>>, vector<1x8x32xf32>
    %86 = vector.shape_cast %85 : vector<1x8x32xf32> to vector<8x32xf32>
    %87 = arith.truncf %86 : vector<8x32xf32> to vector<8x32xbf16>
    %c0_46 = arith.constant 0 : index
    %c0_47 = arith.constant 0 : index
    %88 = vector.load %arg11[%c0_46, %c0_47] : memref<32x32xbf16, #tpu.memory_space<vmem>>, vector<32x32xbf16>
    %cst_48 = arith.constant dense<0.000000e+00> : vector<8x32xf32>
    %89 = tpu.matmul %87, %88, %cst_48 {dimension_numbers = #tpu.dot_dimension_numbers<[1], [0], [0], [1], [0, 0, 1, 1], [], []>} : vector<8x32xbf16>, vector<32x32xbf16>, vector<8x32xf32> -> vector<8x32xf32>
    %c0_49 = arith.constant 0 : index
    %c0_50 = arith.constant 0 : index
    %90 = vector.load %arg12[%c0_49, %c0_50] : memref<1x32xf32, #tpu.memory_space<vmem>>, vector<1x32xf32>
    %91 = vector.broadcast %90 : vector<1x32xf32> to vector<8x32xf32>
    %92 = arith.addf %89, %91 : vector<8x32xf32>
    %93 = vector.shape_cast %92 : vector<8x32xf32> to vector<1x8x32xf32>
    %94 = vector.shape_cast %0 : vector<8x32xf32> to vector<1x8x32xf32>
    %95 = arith.addf %94, %93 : vector<1x8x32xf32>
    %cst_51 = arith.constant dense<0.000000e+00> : vector<1x8xf32>
    %96 = vector.multi_reduction <add>, %95, %cst_51 [2] : vector<1x8x32xf32> to vector<1x8xf32>
    %97 = vector.shape_cast %96 : vector<1x8xf32> to vector<1x8x1xf32>
    %cst_52 = arith.constant 3.200000e+01 : f32
    %98 = vector.broadcast %cst_52 : f32 to vector<1x8x1xf32>
    %99 = arith.divf %97, %98 : vector<1x8x1xf32>
    %100 = vector.broadcast %99 : vector<1x8x1xf32> to vector<1x8x32xf32>
    %101 = arith.subf %95, %100 : vector<1x8x32xf32>
    %102 = arith.mulf %101, %101 : vector<1x8x32xf32>
    %cst_53 = arith.constant dense<0.000000e+00> : vector<1x8xf32>
    %103 = vector.multi_reduction <add>, %102, %cst_53 [2] : vector<1x8x32xf32> to vector<1x8xf32>
    %104 = vector.shape_cast %103 : vector<1x8xf32> to vector<1x8x1xf32>
    %cst_54 = arith.constant 3.200000e+01 : f32
    %105 = vector.broadcast %cst_54 : f32 to vector<1x8x1xf32>
    %106 = arith.divf %104, %105 : vector<1x8x1xf32>
    %cst_55 = arith.constant 9.99999974E-6 : f32
    %107 = vector.broadcast %cst_55 : f32 to vector<1x8x1xf32>
    %108 = arith.addf %106, %107 : vector<1x8x1xf32>
    %109 = math.rsqrt %108 : vector<1x8x1xf32>
    %110 = vector.broadcast %109 : vector<1x8x1xf32> to vector<1x8x32xf32>
    %111 = arith.mulf %101, %110 : vector<1x8x32xf32>
    %c0_56 = arith.constant 0 : index
    %c0_57 = arith.constant 0 : index
    %112 = vector.load %arg13[%c0_56, %c0_57] : memref<1x32xf32, #tpu.memory_space<vmem>>, vector<1x32xf32>
    %113 = vector.shape_cast %112 : vector<1x32xf32> to vector<1x1x32xf32>
    %114 = vector.broadcast %113 : vector<1x1x32xf32> to vector<1x8x32xf32>
    %115 = arith.mulf %111, %114 : vector<1x8x32xf32>
    %c0_58 = arith.constant 0 : index
    %c0_59 = arith.constant 0 : index
    %116 = vector.load %arg14[%c0_58, %c0_59] : memref<1x32xf32, #tpu.memory_space<vmem>>, vector<1x32xf32>
    %117 = vector.shape_cast %116 : vector<1x32xf32> to vector<1x1x32xf32>
    %118 = vector.broadcast %117 : vector<1x1x32xf32> to vector<1x8x32xf32>
    %119 = arith.addf %115, %118 : vector<1x8x32xf32>
    %c0_60 = arith.constant 0 : index
    %c0_61 = arith.constant 0 : index
    %c0_62 = arith.constant 0 : index
    %120 = vector.load %arg15[%c0_60, %c0_61, %c0_62] : memref<1x8x32xf32, #tpu.memory_space<vmem>>, vector<1x8x32xf32>
    tpu.vector_store %arg15[%c0_60, %c0_61, %c0_62], %119 {strides = array<i32>} : memref<1x8x32xf32, #tpu.memory_space<vmem>>, vector<1x8x32xf32>,
    return
  }
  func.func @transform_0(%arg0: i32) -> (i32, i32) {
    %c0_i32 = arith.constant 0 : i32
    %c0_i32_0 = arith.constant 0 : i32
    %c0_i32_1 = arith.constant 0 : i32
    return %c0_i32, %c0_i32_0 : i32, i32
  }
  func.func @transform_1(%arg0: i32) -> (i32, i32) {
    %c0_i32 = arith.constant 0 : i32
    %c0_i32_0 = arith.constant 0 : i32
    %c0_i32_1 = arith.constant 0 : i32
    return %c0_i32, %c0_i32_0 : i32, i32
  }
  func.func @transform_2(%arg0: i32) -> (i32, i32, i32) {
    %c0_i32 = arith.constant 0 : i32
    %c0_i32_0 = arith.constant 0 : i32
    %c0_i32_1 = arith.constant 0 : i32
    return %arg0, %c0_i32, %c0_i32_0 : i32, i32, i32
  }
  func.func @transform_3(%arg0: i32) -> (i32, i32, i32) {
    %c0_i32 = arith.constant 0 : i32
    %c0_i32_0 = arith.constant 0 : i32
    %c0_i32_1 = arith.constant 0 : i32
    return %arg0, %c0_i32, %c0_i32_0 : i32, i32, i32
  }
  func.func @transform_4(%arg0: i32) -> (i32, i32) {
    %c0_i32 = arith.constant 0 : i32
    %c0_i32_0 = arith.constant 0 : i32
    %c0_i32_1 = arith.constant 0 : i32
    return %c0_i32, %c0_i32_0 : i32, i32
  }
  func.func @transform_5(%arg0: i32) -> (i32, i32) {
    %c0_i32 = arith.constant 0 : i32
    %c0_i32_0 = arith.constant 0 : i32
    %c0_i32_1 = arith.constant 0 : i32
    return %c0_i32, %c0_i32_0 : i32, i32
  }
  func.func @transform_6(%arg0: i32) -> (i32, i32) {
    %c0_i32 = arith.constant 0 : i32
    %c0_i32_0 = arith.constant 0 : i32
    %c0_i32_1 = arith.constant 0 : i32
    return %c0_i32, %c0_i32_0 : i32, i32
  }
  func.func @transform_7(%arg0: i32) -> (i32, i32) {
    %c0_i32 = arith.constant 0 : i32
    %c0_i32_0 = arith.constant 0 : i32
    %c0_i32_1 = arith.constant 0 : i32
    return %c0_i32, %c0_i32_0 : i32, i32
  }
  func.func @transform_8(%arg0: i32) -> (i32, i32) {
    %c0_i32 = arith.constant 0 : i32
    %c0_i32_0 = arith.constant 0 : i32
    %c0_i32_1 = arith.constant 0 : i32
    return %c0_i32, %c0_i32_0 : i32, i32
  }
  func.func @transform_9(%arg0: i32) -> (i32, i32) {
    %c0_i32 = arith.constant 0 : i32
    %c0_i32_0 = arith.constant 0 : i32
    %c0_i32_1 = arith.constant 0 : i32
    return %c0_i32, %c0_i32_0 : i32, i32
  }
  func.func @transform_10(%arg0: i32) -> (i32, i32) {
    %c0_i32 = arith.constant 0 : i32
    %c0_i32_0 = arith.constant 0 : i32
    %c0_i32_1 = arith.constant 0 : i32
    return %c0_i32, %c0_i32_0 : i32, i32
  }
  func.func @transform_11(%arg0: i32) -> (i32, i32) {
    %c0_i32 = arith.constant 0 : i32
    %c0_i32_0 = arith.constant 0 : i32
    %c0_i32_1 = arith.constant 0 : i32
    return %c0_i32, %c0_i32_0 : i32, i32
  }
  func.func @transform_12(%arg0: i32) -> (i32, i32) {
    %c0_i32 = arith.constant 0 : i32
    %c0_i32_0 = arith.constant 0 : i32
    %c0_i32_1 = arith.constant 0 : i32
    return %c0_i32, %c0_i32_0 : i32, i32
  }
  func.func @transform_13(%arg0: i32) -> (i32, i32) {
    %c0_i32 = arith.constant 0 : i32
    %c0_i32_0 = arith.constant 0 : i32
    %c0_i32_1 = arith.constant 0 : i32
    return %c0_i32, %c0_i32_0 : i32, i32
  }
  func.func @transform_14(%arg0: i32) -> (i32, i32, i32) {
    %c0_i32 = arith.constant 0 : i32
    %c0_i32_0 = arith.constant 0 : i32
    %c0_i32_1 = arith.constant 0 : i32
    return %arg0, %c0_i32, %c0_i32_0 : i32, i32, i32
  }
  func.func @transform_15(%arg0: i32) -> (i32, i32, i32) {
    %c0_i32 = arith.constant 0 : i32
    %c0_i32_0 = arith.constant 0 : i32
    %c0_i32_1 = arith.constant 0 : i32
    return %arg0, %c0_i32, %c0_i32_0 : i32, i32, i32
  }
}

</mosaic_0001>

<llo_original>
// kernel: tpu_custom_call.1
$region0: #{tpu_custom_call.1}
  #allocation0 [shape = 'u32[]', space=smem, size = 0x4, offset = 0x4, fixed_abs, tag = 'smem constant byte address 0x4 - core index']
  #allocation1 [shape = 'u32[72,128]{1,0:T(1,128)}', space=vmem, size = 0x9000, scoped, tag = 'internal scratch']
  #allocation2 [shape = 'f32[1,8,32]{2,1,0:T(8,128)}', space=vmem, size = 0x1000, scoped, tag = 'scratch operand']
  %s0 = inlined_call_operand.hbm [shape: f32[8,32], index: 0, kind: input, shape index: {}]
  %s1 = inlined_call_operand.hbm [shape: f32[8,32], index: 1, kind: input, shape index: {}]
  %s2 = inlined_call_operand.hbm [shape: f32[2,8,32], index: 2, kind: input, shape index: {}]
  %s3 = inlined_call_operand.hbm [shape: f32[2,8,32], index: 3, kind: input, shape index: {}]
  %s4 = inlined_call_operand.hbm [shape: bf16[32,32], index: 4, kind: input, shape index: {}]
  %s5 = inlined_call_operand.hbm [shape: bf16[32,32], index: 5, kind: input, shape index: {}]
  %s6 = inlined_call_operand.hbm [shape: bf16[32,32], index: 6, kind: input, shape index: {}]
  %s7 = inlined_call_operand.vmem [shape: f32[1,32], index: 7, kind: input, shape index: {}]
  %s8 = inlined_call_operand.vmem [shape: f32[1,32], index: 8, kind: input, shape index: {}]
  %s9 = inlined_call_operand.vmem [shape: f32[1,32], index: 9, kind: input, shape index: {}]
  %s10 = inlined_call_operand.hbm [shape: bf16[32,32], index: 10, kind: input, shape index: {}]
  %s11 = inlined_call_operand.vmem [shape: f32[1,32], index: 11, kind: input, shape index: {}]
  %s12 = inlined_call_operand.vmem [shape: f32[1,32], index: 12, kind: input, shape index: {}]
  %s13 = inlined_call_operand.vmem [shape: f32[1,32], index: 13, kind: input, shape index: {}]
  %s14 = inlined_call_operand.hbm [shape: f32[2,8,32], index: 14, kind: output, shape index: {0}]
  %s15 = inlined_call_operand.hbm [shape: f32[2,8,128], index: 15, kind: output, shape index: {1}]
  %16 = xla_tuple %s14, %s15
  %s17 = sld [smem:[#allocation0]]
  $region129: #{tpu_custom_call.1} parent=0
    _
  %s19 = ssub.s32 1, %s17
  %s20 = scalar_select 0, %s19, %s17
  $region1: #{tpu_custom_call.1} parent=0
    #allocation3 [shape = 'u8[4096]{0}', space=vmem, size = 0x1000, scoped, tag = 'input window, operand 0, single buffered']
    #allocation4 [shape = 's32[2]{0}', space=sflag, size = 0x8, scoped, tag = 'scoped memory for tpu_custom_call.1']
    #allocation5 [shape = 's32[2]{0}', space=sflag, size = 0x8, scoped, tag = 'scoped memory for tpu_custom_call.1']
    #allocation6 [shape = 'u8[4096]{0}', space=vmem, size = 0x1000, scoped, tag = 'input window, operand 1, single buffered']
    #allocation7 [shape = 's32[1]{0}', space=sflag, size = 0x4, scoped, tag = 'scoped memory for tpu_custom_call.1']
    #allocation8 [shape = 'u8[8192]{0}', space=vmem, size = 0x2000, scoped, tag = 'input window, operand 2']
    #allocation9 [shape = 'u8[8192]{0}', space=vmem, size = 0x2000, scoped, tag = 'input window, operand 3']
    #allocation10 [shape = 'u8[8192]{0}', space=vmem, size = 0x2000, scoped, tag = 'input window, operand 4, single buffered']
    #allocation11 [shape = 'u8[8192]{0}', space=vmem, size = 0x2000, scoped, tag = 'input window, operand 5, single buffered']
    #allocation12 [shape = 's32[1]{0}', space=sflag, size = 0x4, scoped, tag = 'scoped memory for tpu_custom_call.1']
    #allocation13 [shape = 'u8[8192]{0}', space=vmem, size = 0x2000, scoped, tag = 'input window, operand 6, single buffered']
    #allocation14 [shape = 'u8[8192]{0}', space=vmem, size = 0x2000, scoped, tag = 'input window, operand 10, single buffered']
    #allocation15 [shape = 's32[1]{0}', space=sflag, size = 0x4, scoped, tag = 'scoped memory for tpu_custom_call.1']
    #allocation16 [shape = 'u8[8192]{0}', space=vmem, size = 0x2000, scoped, tag = 'output window, operand 0']
    #allocation17 [shape = 'u8[8192]{0}', space=vmem, size = 0x2000, scoped, tag = 'output window, operand 1']
    #allocation18 [shape = 's32[2]{0}', space=sflag, size = 0x8, scoped, tag = 'scoped memory for tpu_custom_call.1']
    %21 = vsyncpa [#allocation4], 0
    %22 = vsyncpa [#allocation7], 0
    %23 = vsyncpa [#allocation12], 0
    %24 = vsyncpa [#allocation15], 0
    %25 = vsyncpa [#allocation5], 0
    %s26 = scalar_lea.sflag [#allocation5], 1
    %27 = vsyncpa %s26, 0
    %28 = vsyncpa [#allocation18], 0
    %s29 = scalar_lea.sflag [#allocation18], 1
    %30 = vsyncpa %s29, 0
    loop: start=0, step=1, limit=4
    $region2: #{tpu_custom_call.1} parent=1 // loop_pre_header
      _
    $region3: #{tpu_custom_call.1} parent=1 // loop_header
      %s32 = sphi 0, %s36
      %p33 = scmp.ge.s32.totalorder %s32, 4
      %s40 = sphi 0, %s40
      %s42 = sphi 0, %s40
      %s43 = sphi 0, %s42
      %s57 = sphi 0, %s43
      %s61 = sphi 0, %s61
      %s63 = sphi 0, %s61
      %s64 = sphi 0, %s63
      %s78 = sphi 0, %s64
      %s84 = sphi 0, %s86
      %s87 = sphi 0, %s84
      %s88 = sphi 0, %s87
      %s104 = sphi 0, %s88
      %s110 = sphi 0, %s112
      %s113 = sphi 0, %s110
      %s114 = sphi 0, %s113
      %s130 = sphi 0, %s114
      %s134 = sphi 0, %s134
      %s136 = sphi 0, %s134
      %s137 = sphi 0, %s136
      %s151 = sphi 0, %s137
      %s155 = sphi 0, %s155
      %s157 = sphi 0, %s155
      %s158 = sphi 0, %s157
      %s172 = sphi 0, %s158
      %s176 = sphi 0, %s176
      %s178 = sphi 0, %s176
      %s179 = sphi 0, %s178
      %s193 = sphi 0, %s179
      %s197 = sphi 0, %s197
      %s199 = sphi 0, %s197
      %s200 = sphi 0, %s199
      %s214 = sphi 0, %s200
      %s218 = sphi 0, %s218
      %s220 = sphi 0, %s218
      %s221 = sphi 0, %s220
      %s235 = sphi 0, %s221
      %s239 = sphi 0, %s239
      %s241 = sphi 0, %s239
      %s242 = sphi 0, %s241
      %s256 = sphi 0, %s242
      %s260 = sphi 0, %s260
      %s262 = sphi 0, %s260
      %s263 = sphi 0, %s262
      %s277 = sphi 0, %s263
      %s281 = sphi 0, %s281
      %s283 = sphi 0, %s281
      %s284 = sphi 0, %s283
      %s298 = sphi 0, %s284
      %s302 = sphi 0, %s302
      %s304 = sphi 0, %s302
      %s305 = sphi 0, %s304
      %s319 = sphi 0, %s305
      %s323 = sphi 0, %s323
      %s325 = sphi 0, %s323
      %s326 = sphi 0, %s325
      %s340 = sphi 0, %s326
      %s346 = sphi 0, %s348
      %s349 = sphi 0, %s346
      %s350 = sphi 0, %s349
      %s366 = sphi 0, %s350
      %s372 = sphi 0, %s374
      %s375 = sphi 0, %s372
      %s376 = sphi 0, %s375
      %s392 = sphi 0, %s376
    $region4: #{tpu_custom_call.1} parent=1 // loop_header_branch
      %35 = sbr.rel (%p33) target = $region8
    $region5: #{tpu_custom_call.1} parent=1 // loop_body
      %s37 = ssub.s32 %s32, 1
      %s38 = ssub.s32 %s32, 2
      %s39 = sadd.s32 %s32, 1
      %s41 = sadd.s32 %s40, 1
      %p44 = scmp.eq.s32.totalorder %s32, 1
      %p45 = scmp.ne.s32.totalorder %s40, %s42
      %p46 = scmp.eq.s32.totalorder %s32, 0
      %p47 = por %p45, %p46
      %p48 = scmp.ne.s32.totalorder %s40, %s42
      %p49 = scmp.eq.s32.totalorder %s37, 1
      %p50 = por %p48, %p49
      %p51 = scmp.ne.s32.totalorder %s42, %s43
      %p52 = scmp.eq.s32.totalorder %s37, 0
      %p53 = por %p51, %p52
      %p54 = scmp.ne.s32.totalorder %s42, %s43
      %p55 = scmp.eq.s32.totalorder %s38, 1
      %p56 = por %p54, %p55
      %p58 = scmp.ne.s32.totalorder %s43, %s57
      %p59 = scmp.eq.s32.totalorder %s38, 0
      %p60 = por %p58, %p59
      %s62 = sadd.s32 %s61, 1
      %p65 = scmp.eq.s32.totalorder %s32, 1
      %p66 = scmp.ne.s32.totalorder %s61, %s63
      %p67 = scmp.eq.s32.totalorder %s32, 0
      %p68 = por %p66, %p67
      %p69 = scmp.ne.s32.totalorder %s61, %s63
      %p70 = scmp.eq.s32.totalorder %s37, 1
      %p71 = por %p69, %p70
      %p72 = scmp.ne.s32.totalorder %s63, %s64
      %p73 = scmp.eq.s32.totalorder %s37, 0
      %p74 = por %p72, %p73
      %p75 = scmp.ne.s32.totalorder %s63, %s64
      %p76 = scmp.eq.s32.totalorder %s38, 1
      %p77 = por %p75, %p76
      %p79 = scmp.ne.s32.totalorder %s64, %s78
      %p80 = scmp.eq.s32.totalorder %s38, 0
      %p81 = por %p79, %p80
      %s82 = ssub.s32 %s32, %s39
      %p83 = scmp.eq.s32.totalorder %s82, 0
      %s85 = sadd.s32 %s84, 1
      %s86 = scalar_select %p83, %s84, %s85
      %p89 = pneg %p83
      %p90 = scmp.eq.s32.totalorder %s32, 1
      %p91 = por %p89, %p90
      %p92 = scmp.ne.s32.totalorder %s84, %s87
      %p93 = scmp.eq.s32.totalorder %s32, 0
      %p94 = por %p92, %p93
      %p95 = scmp.ne.s32.totalorder %s84, %s87
      %p96 = scmp.eq.s32.totalorder %s37, 1
      %p97 = por %p95, %p96
      %p98 = scmp.ne.s32.totalorder %s87, %s88
      %p99 = scmp.eq.s32.totalorder %s37, 0
      %p100 = por %p98, %p99
      %p101 = scmp.ne.s32.totalorder %s87, %s88
      %p102 = scmp.eq.s32.totalorder %s38, 1
      %p103 = por %p101, %p102
      %p105 = scmp.ne.s32.totalorder %s88, %s104
      %p106 = scmp.eq.s32.totalorder %s38, 0
      %p107 = por %p105, %p106
      %s108 = ssub.s32 %s32, %s39
      %p109 = scmp.eq.s32.totalorder %s108, 0
      %s111 = sadd.s32 %s110, 1
      %s112 = scalar_select %p109, %s110, %s111
      %p115 = pneg %p109
      %p116 = scmp.eq.s32.totalorder %s32, 1
      %p117 = por %p115, %p116
      %p118 = scmp.ne.s32.totalorder %s110, %s113
      %p119 = scmp.eq.s32.totalorder %s32, 0
      %p120 = por %p118, %p119
      %p121 = scmp.ne.s32.totalorder %s110, %s113
      %p122 = scmp.eq.s32.totalorder %s37, 1
      %p123 = por %p121, %p122
      %p124 = scmp.ne.s32.totalorder %s113, %s114
      %p125 = scmp.eq.s32.totalorder %s37, 0
      %p126 = por %p124, %p125
      %p127 = scmp.ne.s32.totalorder %s113, %s114
      %p128 = scmp.eq.s32.totalorder %s38, 1
      %p129 = por %p127, %p128
      %p131 = scmp.ne.s32.totalorder %s114, %s130
      %p132 = scmp.eq.s32.totalorder %s38, 0
      %p133 = por %p131, %p132
      %s135 = sadd.s32 %s134, 1
      %p138 = scmp.eq.s32.totalorder %s32, 1
      %p139 = scmp.ne.s32.totalorder %s134, %s136
      %p140 = scmp.eq.s32.totalorder %s32, 0
      %p141 = por %p139, %p140
      %p142 = scmp.ne.s32.totalorder %s134, %s136
      %p143 = scmp.eq.s32.totalorder %s37, 1
      %p144 = por %p142, %p143
      %p145 = scmp.ne.s32.totalorder %s136, %s137
      %p146 = scmp.eq.s32.totalorder %s37, 0
      %p147 = por %p145, %p146
      %p148 = scmp.ne.s32.totalorder %s136, %s137
      %p149 = scmp.eq.s32.totalorder %s38, 1
      %p150 = por %p148, %p149
      %p152 = scmp.ne.s32.totalorder %s137, %s151
      %p153 = scmp.eq.s32.totalorder %s38, 0
      %p154 = por %p152, %p153
      %s156 = sadd.s32 %s155, 1
      %p159 = scmp.eq.s32.totalorder %s32, 1
      %p160 = scmp.ne.s32.totalorder %s155, %s157
      %p161 = scmp.eq.s32.totalorder %s32, 0
      %p162 = por %p160, %p161
      %p163 = scmp.ne.s32.totalorder %s155, %s157
      %p164 = scmp.eq.s32.totalorder %s37, 1
      %p165 = por %p163, %p164
      %p166 = scmp.ne.s32.totalorder %s157, %s158
      %p167 = scmp.eq.s32.totalorder %s37, 0
      %p168 = por %p166, %p167
      %p169 = scmp.ne.s32.totalorder %s157, %s158
      %p170 = scmp.eq.s32.totalorder %s38, 1
      %p171 = por %p169, %p170
      %p173 = scmp.ne.s32.totalorder %s158, %s172
      %p174 = scmp.eq.s32.totalorder %s38, 0
      %p175 = por %p173, %p174
      %s177 = sadd.s32 %s176, 1
      %p180 = scmp.eq.s32.totalorder %s32, 1
      %p181 = scmp.ne.s32.totalorder %s176, %s178
      %p182 = scmp.eq.s32.totalorder %s32, 0
      %p183 = por %p181, %p182
      %p184 = scmp.ne.s32.totalorder %s176, %s178
      %p185 = scmp.eq.s32.totalorder %s37, 1
      %p186 = por %p184, %p185
      %p187 = scmp.ne.s32.totalorder %s178, %s179
      %p188 = scmp.eq.s32.totalorder %s37, 0
      %p189 = por %p187, %p188
      %p190 = scmp.ne.s32.totalorder %s178, %s179
      %p191 = scmp.eq.s32.totalorder %s38, 1
      %p192 = por %p190, %p191
      %p194 = scmp.ne.s32.totalorder %s179, %s193
      %p195 = scmp.eq.s32.totalorder %s38, 0
      %p196 = por %p194, %p195
      %s198 = sadd.s32 %s197, 1
      %p201 = scmp.eq.s32.totalorder %s32, 1
      %p202 = scmp.ne.s32.totalorder %s197, %s199
      %p203 = scmp.eq.s32.totalorder %s32, 0
      %p204 = por %p202, %p203
      %p205 = scmp.ne.s32.totalorder %s197, %s199
      %p206 = scmp.eq.s32.totalorder %s37, 1
      %p207 = por %p205, %p206
      %p208 = scmp.ne.s32.totalorder %s199, %s200
      %p209 = scmp.eq.s32.totalorder %s37, 0
      %p210 = por %p208, %p209
      %p211 = scmp.ne.s32.totalorder %s199, %s200
      %p212 = scmp.eq.s32.totalorder %s38, 1
      %p213 = por %p211, %p212
      %p215 = scmp.ne.s32.totalorder %s200, %s214
      %p216 = scmp.eq.s32.totalorder %s38, 0
      %p217 = por %p215, %p216
      %s219 = sadd.s32 %s218, 1
      %p222 = scmp.eq.s32.totalorder %s32, 1
      %p223 = scmp.ne.s32.totalorder %s218, %s220
      %p224 = scmp.eq.s32.totalorder %s32, 0
      %p225 = por %p223, %p224
      %p226 = scmp.ne.s32.totalorder %s218, %s220
      %p227 = scmp.eq.s32.totalorder %s37, 1
      %p228 = por %p226, %p227
      %p229 = scmp.ne.s32.totalorder %s220, %s221
      %p230 = scmp.eq.s32.totalorder %s37, 0
      %p231 = por %p229, %p230
      %p232 = scmp.ne.s32.totalorder %s220, %s221
      %p233 = scmp.eq.s32.totalorder %s38, 1
      %p234 = por %p232, %p233
      %p236 = scmp.ne.s32.totalorder %s221, %s235
      %p237 = scmp.eq.s32.totalorder %s38, 0
      %p238 = por %p236, %p237
      %s240 = sadd.s32 %s239, 1
      %p243 = scmp.eq.s32.totalorder %s32, 1
      %p244 = scmp.ne.s32.totalorder %s239, %s241
      %p245 = scmp.eq.s32.totalorder %s32, 0
      %p246 = por %p244, %p245
      %p247 = scmp.ne.s32.totalorder %s239, %s241
      %p248 = scmp.eq.s32.totalorder %s37, 1
      %p249 = por %p247, %p248
      %p250 = scmp.ne.s32.totalorder %s241, %s242
      %p251 = scmp.eq.s32.totalorder %s37, 0
      %p252 = por %p250, %p251
      %p253 = scmp.ne.s32.totalorder %s241, %s242
      %p254 = scmp.eq.s32.totalorder %s38, 1
      %p255 = por %p253, %p254
      %p257 = scmp.ne.s32.totalorder %s242, %s256
      %p258 = scmp.eq.s32.totalorder %s38, 0
      %p259 = por %p257, %p258
      %s261 = sadd.s32 %s260, 1
      %p264 = scmp.eq.s32.totalorder %s32, 1
      %p265 = scmp.ne.s32.totalorder %s260, %s262
      %p266 = scmp.eq.s32.totalorder %s32, 0
      %p267 = por %p265, %p266
      %p268 = scmp.ne.s32.totalorder %s260, %s262
      %p269 = scmp.eq.s32.totalorder %s37, 1
      %p270 = por %p268, %p269
      %p271 = scmp.ne.s32.totalorder %s262, %s263
      %p272 = scmp.eq.s32.totalorder %s37, 0
      %p273 = por %p271, %p272
      %p274 = scmp.ne.s32.totalorder %s262, %s263
      %p275 = scmp.eq.s32.totalorder %s38, 1
      %p276 = por %p274, %p275
      %p278 = scmp.ne.s32.totalorder %s263, %s277
      %p279 = scmp.eq.s32.totalorder %s38, 0
      %p280 = por %p278, %p279
      %s282 = sadd.s32 %s281, 1
      %p285 = scmp.eq.s32.totalorder %s32, 1
      %p286 = scmp.ne.s32.totalorder %s281, %s283
      %p287 = scmp.eq.s32.totalorder %s32, 0
      %p288 = por %p286, %p287
      %p289 = scmp.ne.s32.totalorder %s281, %s283
      %p290 = scmp.eq.s32.totalorder %s37, 1
      %p291 = por %p289, %p290
      %p292 = scmp.ne.s32.totalorder %s283, %s284
      %p293 = scmp.eq.s32.totalorder %s37, 0
      %p294 = por %p292, %p293
      %p295 = scmp.ne.s32.totalorder %s283, %s284
      %p296 = scmp.eq.s32.totalorder %s38, 1
      %p297 = por %p295, %p296
      %p299 = scmp.ne.s32.totalorder %s284, %s298
      %p300 = scmp.eq.s32.totalorder %s38, 0
      %p301 = por %p299, %p300
      %s303 = sadd.s32 %s302, 1
      %p306 = scmp.eq.s32.totalorder %s32, 1
      %p307 = scmp.ne.s32.totalorder %s302, %s304
      %p308 = scmp.eq.s32.totalorder %s32, 0
      %p309 = por %p307, %p308
      %p310 = scmp.ne.s32.totalorder %s302, %s304
      %p311 = scmp.eq.s32.totalorder %s37, 1
      %p312 = por %p310, %p311
      %p313 = scmp.ne.s32.totalorder %s304, %s305
      %p314 = scmp.eq.s32.totalorder %s37, 0
      %p315 = por %p313, %p314
      %p316 = scmp.ne.s32.totalorder %s304, %s305
      %p317 = scmp.eq.s32.totalorder %s38, 1
      %p318 = por %p316, %p317
      %p320 = scmp.ne.s32.totalorder %s305, %s319
      %p321 = scmp.eq.s32.totalorder %s38, 0
      %p322 = por %p320, %p321
      %s324 = sadd.s32 %s323, 1
      %p327 = scmp.eq.s32.totalorder %s32, 1
      %p328 = scmp.ne.s32.totalorder %s323, %s325
      %p329 = scmp.eq.s32.totalorder %s32, 0
      %p330 = por %p328, %p329
      %p331 = scmp.ne.s32.totalorder %s323, %s325
      %p332 = scmp.eq.s32.totalorder %s37, 1
      %p333 = por %p331, %p332
      %p334 = scmp.ne.s32.totalorder %s325, %s326
      %p335 = scmp.eq.s32.totalorder %s37, 0
      %p336 = por %p334, %p335
      %p337 = scmp.ne.s32.totalorder %s325, %s326
      %p338 = scmp.eq.s32.totalorder %s38, 1
      %p339 = por %p337, %p338
      %p341 = scmp.ne.s32.totalorder %s326, %s340
      %p342 = scmp.eq.s32.totalorder %s38, 0
      %p343 = por %p341, %p342
      %s344 = ssub.s32 %s32, %s39
      %p345 = scmp.eq.s32.totalorder %s344, 0
      %s347 = sadd.s32 %s346, 1
      %s348 = scalar_select %p345, %s346, %s347
      %p351 = pneg %p345
      %p352 = scmp.eq.s32.totalorder %s32, 1
      %p353 = por %p351, %p352
      %p354 = scmp.ne.s32.totalorder %s346, %s349
      %p355 = scmp.eq.s32.totalorder %s32, 0
      %p356 = por %p354, %p355
      %p357 = scmp.ne.s32.totalorder %s346, %s349
      %p358 = scmp.eq.s32.totalorder %s37, 1
      %p359 = por %p357, %p358
      %p360 = scmp.ne.s32.totalorder %s349, %s350
      %p361 = scmp.eq.s32.totalorder %s37, 0
      %p362 = por %p360, %p361
      %p363 = scmp.ne.s32.totalorder %s349, %s350
      %p364 = scmp.eq.s32.totalorder %s38, 1
      %p365 = por %p363, %p364
      %p367 = scmp.ne.s32.totalorder %s350, %s366
      %p368 = scmp.eq.s32.totalorder %s38, 0
      %p369 = por %p367, %p368
      %s370 = ssub.s32 %s32, %s39
      %p371 = scmp.eq.s32.totalorder %s370, 0
      %s373 = sadd.s32 %s372, 1
      %s374 = scalar_select %p371, %s372, %s373
      %p377 = pneg %p371
      %p378 = scmp.eq.s32.totalorder %s32, 1
      %p379 = por %p377, %p378
      %p380 = scmp.ne.s32.totalorder %s372, %s375
      %p381 = scmp.eq.s32.totalorder %s32, 0
      %p382 = por %p380, %p381
      %p383 = scmp.ne.s32.totalorder %s372, %s375
      %p384 = scmp.eq.s32.totalorder %s37, 1
      %p385 = por %p383, %p384
      %p386 = scmp.ne.s32.totalorder %s375, %s376
      %p387 = scmp.eq.s32.totalorder %s37, 0
      %p388 = por %p386, %p387
      %p389 = scmp.ne.s32.totalorder %s375, %s376
      %p390 = scmp.eq.s32.totalorder %s38, 1
      %p391 = por %p389, %p390
      %p393 = scmp.ne.s32.totalorder %s376, %s392
      %p394 = scmp.eq.s32.totalorder %s38, 0
      %p395 = por %p393, %p394
      %p396 = scmp.le.s32.totalorder 1, %s32
      %p397 = scmp.lt.s32.totalorder %s32, 3
      %p398 = pnand %p396, %p397
      %p399 = pneg %p398
      // Predicated region
      $region9: #{tpu_custom_call.1} parent=5 // pred_check
        _
      $region10: #{tpu_custom_call.1} parent=5 // pred_check_branch
        %401 = sbr.rel (%p398) target = $region12
      $region11: #{tpu_custom_call.1} parent=5 // pred_region
        %s402 = ssub.s32 %s32, 1
        // Predicated region
        $region13: #{tpu_custom_call.1} parent=11 // pred_check
          %p403 = pneg %p53
        $region14: #{tpu_custom_call.1} parent=11 // pred_check_branch
          %405 = sbr.rel (%p403) target = $region16
        $region15: #{tpu_custom_call.1} parent=11 // pred_region
          %407 = vsyncadd [#allocation4], 0
          %s409 = sshll.u32 %s0, 4
          %s410 = int_to_ptr.hbm [resolvable:$true] %s409
          %s411 = sshll.u32 [#allocation3], 4
          %s412 = int_to_ptr.vmem [resolvable:$true] %s411
          %414 = dma.hbm_to_vmem [thread:$0]  %s410, 128, %s412, [#allocation4]
        $region16: #{tpu_custom_call.1} parent=11 // pred_fallthru
          _
        // Predicated region
        $region17: #{tpu_custom_call.1} parent=11 // pred_check
          %p415 = pneg %p74
        $region18: #{tpu_custom_call.1} parent=11 // pred_check_branch
          %417 = sbr.rel (%p415) target = $region20
        $region19: #{tpu_custom_call.1} parent=11 // pred_region
          %419 = vsyncadd [#allocation7], 0
          %s421 = sshll.u32 %s1, 4
          %s422 = int_to_ptr.hbm [resolvable:$true] %s421
          %s423 = sshll.u32 [#allocation6], 4
          %s424 = int_to_ptr.vmem [resolvable:$true] %s423
          %426 = dma.hbm_to_vmem [thread:$0]  %s422, 128, %s424, [#allocation7]
        $region20: #{tpu_custom_call.1} parent=11 // pred_fallthru
          _
        // Predicated region
        $region21: #{tpu_custom_call.1} parent=11 // pred_check
          %p427 = pneg %p147
        $region22: #{tpu_custom_call.1} parent=11 // pred_check_branch
          %429 = sbr.rel (%p427) target = $region24
        $region23: #{tpu_custom_call.1} parent=11 // pred_region
          %431 = vsyncadd [#allocation7], 0
          %s432 = sshll.u32 %s4, 4
          %s433 = int_to_ptr.hbm [resolvable:$true] %s432
          %s434 = sshll.u32 [#allocation10], 4
          %s435 = int_to_ptr.vmem [resolvable:$true] %s434
          %440 = dma.hbm_to_vmem [thread:$0]  %s433, 256, %s435, [#allocation7], 64, 64, 4
        $region24: #{tpu_custom_call.1} parent=11 // pred_fallthru
          _
        // Predicated region
        $region25: #{tpu_custom_call.1} parent=11 // pred_check
          %p441 = pneg %p168
        $region26: #{tpu_custom_call.1} parent=11 // pred_check_branch
          %443 = sbr.rel (%p441) target = $region28
        $region27: #{tpu_custom_call.1} parent=11 // pred_region
          %445 = vsyncadd [#allocation12], 0
          %s446 = sshll.u32 %s5, 4
          %s447 = int_to_ptr.hbm [resolvable:$true] %s446
          %s448 = sshll.u32 [#allocation11], 4
          %s449 = int_to_ptr.vmem [resolvable:$true] %s448
          %454 = dma.hbm_to_vmem [thread:$0]  %s447, 256, %s449, [#allocation12], 64, 64, 4
        $region28: #{tpu_custom_call.1} parent=11 // pred_fallthru
          _
        // Predicated region
        $region29: #{tpu_custom_call.1} parent=11 // pred_check
          %p455 = pneg %p189
        $region30: #{tpu_custom_call.1} parent=11 // pred_check_branch
          %457 = sbr.rel (%p455) target = $region32
        $region31: #{tpu_custom_call.1} parent=11 // pred_region
          %459 = vsyncadd [#allocation12], 0
          %s460 = sshll.u32 %s6, 4
          %s461 = int_to_ptr.hbm [resolvable:$true] %s460
          %s462 = sshll.u32 [#allocation13], 4
          %s463 = int_to_ptr.vmem [resolvable:$true] %s462
          %468 = dma.hbm_to_vmem [thread:$0]  %s461, 256, %s463, [#allocation12], 64, 64, 4
        $region32: #{tpu_custom_call.1} parent=11 // pred_fallthru
          _
        // Predicated region
        $region33: #{tpu_custom_call.1} parent=11 // pred_check
          %p469 = pneg %p210
        $region34: #{tpu_custom_call.1} parent=11 // pred_check_branch
          %471 = sbr.rel (%p469) target = $region36
        $region35: #{tpu_custom_call.1} parent=11 // pred_region
          _
        $region36: #{tpu_custom_call.1} parent=11 // pred_fallthru
          _
        // Predicated region
        $region37: #{tpu_custom_call.1} parent=11 // pred_check
          %p472 = pneg %p231
        $region38: #{tpu_custom_call.1} parent=11 // pred_check_branch
          %474 = sbr.rel (%p472) target = $region40
        $region39: #{tpu_custom_call.1} parent=11 // pred_region
          _
        $region40: #{tpu_custom_call.1} parent=11 // pred_fallthru
          _
        // Predicated region
        $region41: #{tpu_custom_call.1} parent=11 // pred_check
          %p475 = pneg %p252
        $region42: #{tpu_custom_call.1} parent=11 // pred_check_branch
          %477 = sbr.rel (%p475) target = $region44
        $region43: #{tpu_custom_call.1} parent=11 // pred_region
          _
        $region44: #{tpu_custom_call.1} parent=11 // pred_fallthru
          _
        // Predicated region
        $region45: #{tpu_custom_call.1} parent=11 // pred_check
          %p478 = pneg %p273
        $region46: #{tpu_custom_call.1} parent=11 // pred_check_branch
          %480 = sbr.rel (%p478) target = $region48
        $region47: #{tpu_custom_call.1} parent=11 // pred_region
          %482 = vsyncadd [#allocation15], 0
          %s483 = sshll.u32 %s10, 4
          %s484 = int_to_ptr.hbm [resolvable:$true] %s483
          %s485 = sshll.u32 [#allocation14], 4
          %s486 = int_to_ptr.vmem [resolvable:$true] %s485
          %491 = dma.hbm_to_vmem [thread:$0]  %s484, 256, %s486, [#allocation15], 64, 64, 4
        $region48: #{tpu_custom_call.1} parent=11 // pred_fallthru
          _
        // Predicated region
        $region49: #{tpu_custom_call.1} parent=11 // pred_check
          %p492 = pneg %p294
        $region50: #{tpu_custom_call.1} parent=11 // pred_check_branch
          %494 = sbr.rel (%p492) target = $region52
        $region51: #{tpu_custom_call.1} parent=11 // pred_region
          _
        $region52: #{tpu_custom_call.1} parent=11 // pred_fallthru
          _
        // Predicated region
        $region53: #{tpu_custom_call.1} parent=11 // pred_check
          %p495 = pneg %p315
        $region54: #{tpu_custom_call.1} parent=11 // pred_check_branch
          %497 = sbr.rel (%p495) target = $region56
        $region55: #{tpu_custom_call.1} parent=11 // pred_region
          _
        $region56: #{tpu_custom_call.1} parent=11 // pred_fallthru
          _
        // Predicated region
        $region57: #{tpu_custom_call.1} parent=11 // pred_check
          %p498 = pneg %p336
        $region58: #{tpu_custom_call.1} parent=11 // pred_check_branch
          %500 = sbr.rel (%p498) target = $region60
        $region59: #{tpu_custom_call.1} parent=11 // pred_region
          _
        $region60: #{tpu_custom_call.1} parent=11 // pred_fallthru
          _
      $region12: #{tpu_custom_call.1} parent=5 // pred_fallthru
        _
      %p501 = scmp.lt.s32.totalorder %s32, 2
      // Predicated region
      $region61: #{tpu_custom_call.1} parent=5 // pred_check
        %p502 = pneg %p501
      $region62: #{tpu_custom_call.1} parent=5 // pred_check_branch
        %504 = sbr.rel (%p502) target = $region64
      $region63: #{tpu_custom_call.1} parent=5 // pred_region
        // Predicated region
        $region65: #{tpu_custom_call.1} parent=63 // pred_check
          %p505 = pneg %p94
        $region66: #{tpu_custom_call.1} parent=63 // pred_check_branch
          %507 = sbr.rel (%p505) target = $region68
        $region67: #{tpu_custom_call.1} parent=63 // pred_region
          %s508 = sand.u32 %s32, 1
          %s509 = scalar_lea.sflag [#allocation4], %s508
          %s510 = sand.u32 %s84, 1
          %s511 = smul.addr %s510, 8
          %s512 = scalar_lea.vmem [#allocation8], %s511
          %514 = vsyncadd %s509, 0
          %s515 = smul.addr %s32, 8
          %s516 = scalar_lea.hbm %s2, %s515
          %s518 = sshll.u32 %s516, 4
          %s519 = int_to_ptr.hbm [resolvable:$true] %s518
          %s520 = sshll.u32 %s512, 4
          %s521 = int_to_ptr.vmem [resolvable:$true] %s520
          %523 = dma.hbm_to_vmem [thread:$0]  %s519, 128, %s521, %s509
        $region68: #{tpu_custom_call.1} parent=63 // pred_fallthru
          _
        // Predicated region
        $region69: #{tpu_custom_call.1} parent=63 // pred_check
          %p524 = pneg %p120
        $region70: #{tpu_custom_call.1} parent=63 // pred_check_branch
          %526 = sbr.rel (%p524) target = $region72
        $region71: #{tpu_custom_call.1} parent=63 // pred_region
          %s527 = sand.u32 %s32, 1
          %s528 = scalar_lea.sflag [#allocation4], %s527
          %s529 = sand.u32 %s110, 1
          %s530 = smul.addr %s529, 8
          %s531 = scalar_lea.vmem [#allocation9], %s530
          %533 = vsyncadd %s528, 0
          %s534 = smul.addr %s32, 8
          %s535 = scalar_lea.hbm %s3, %s534
          %s537 = sshll.u32 %s535, 4
          %s538 = int_to_ptr.hbm [resolvable:$true] %s537
          %s539 = sshll.u32 %s531, 4
          %s540 = int_to_ptr.vmem [resolvable:$true] %s539
          %542 = dma.hbm_to_vmem [thread:$0]  %s538, 128, %s540, %s528
        $region72: #{tpu_custom_call.1} parent=63 // pred_fallthru
          _
      $region64: #{tpu_custom_call.1} parent=5 // pred_fallthru
        _
      %p543 = scmp.le.s32.totalorder 1, %s32
      %p544 = scmp.lt.s32.totalorder %s32, 3
      %p545 = pnand %p543, %p544
      %p546 = pneg %p545
      // Predicated region
      $region73: #{tpu_custom_call.1} parent=5 // pred_check
        _
      $region74: #{tpu_custom_call.1} parent=5 // pred_check_branch
        %548 = sbr.rel (%p545) target = $region76
      $region75: #{tpu_custom_call.1} parent=5 // pred_region
        %s549 = ssub.s32 %s32, 1
        // Predicated region
        $region77: #{tpu_custom_call.1} parent=75 // pred_check
          %p550 = pneg %p53
        $region78: #{tpu_custom_call.1} parent=75 // pred_check_branch
          %552 = sbr.rel (%p550) target = $region80
        $region79: #{tpu_custom_call.1} parent=75 // pred_region
          %554 = dma.done [#allocation4], 128
        $region80: #{tpu_custom_call.1} parent=75 // pred_fallthru
          _
        // Predicated region
        $region81: #{tpu_custom_call.1} parent=75 // pred_check
          %p555 = pneg %p74
        $region82: #{tpu_custom_call.1} parent=75 // pred_check_branch
          %557 = sbr.rel (%p555) target = $region84
        $region83: #{tpu_custom_call.1} parent=75 // pred_region
          %559 = dma.done [#allocation7], 128
        $region84: #{tpu_custom_call.1} parent=75 // pred_fallthru
          _
        %s560 = sand.u32 %s37, 1
        %s561 = scalar_lea.sflag [#allocation4], %s560
        %s562 = sand.u32 %s87, 1
        %s563 = smul.addr %s562, 8
        %s564 = scalar_lea.vmem [#allocation8], %s563
        // Predicated region
        $region85: #{tpu_custom_call.1} parent=75 // pred_check
          %p565 = pneg %p100
        $region86: #{tpu_custom_call.1} parent=75 // pred_check_branch
          %567 = sbr.rel (%p565) target = $region88
        $region87: #{tpu_custom_call.1} parent=75 // pred_region
          %569 = dma.done %s561, 128
        $region88: #{tpu_custom_call.1} parent=75 // pred_fallthru
          _
        %s570 = sand.u32 %s37, 1
        %s571 = scalar_lea.sflag [#allocation4], %s570
        %s572 = sand.u32 %s113, 1
        %s573 = smul.addr %s572, 8
        %s574 = scalar_lea.vmem [#allocation9], %s573
        // Predicated region
        $region89: #{tpu_custom_call.1} parent=75 // pred_check
          %p575 = pneg %p126
        $region90: #{tpu_custom_call.1} parent=75 // pred_check_branch
          %577 = sbr.rel (%p575) target = $region92
        $region91: #{tpu_custom_call.1} parent=75 // pred_region
          %579 = dma.done %s571, 128
        $region92: #{tpu_custom_call.1} parent=75 // pred_fallthru
          _
        // Predicated region
        $region93: #{tpu_custom_call.1} parent=75 // pred_check
          %p580 = pneg %p147
        $region94: #{tpu_custom_call.1} parent=75 // pred_check_branch
          %582 = sbr.rel (%p580) target = $region96
        $region95: #{tpu_custom_call.1} parent=75 // pred_region
          %584 = dma.done [#allocation7], 256
        $region96: #{tpu_custom_call.1} parent=75 // pred_fallthru
          _
        // Predicated region
        $region97: #{tpu_custom_call.1} parent=75 // pred_check
          %p585 = pneg %p168
        $region98: #{tpu_custom_call.1} parent=75 // pred_check_branch
          %587 = sbr.rel (%p585) target = $region100
        $region99: #{tpu_custom_call.1} parent=75 // pred_region
          %589 = dma.done [#allocation12], 256
        $region100: #{tpu_custom_call.1} parent=75 // pred_fallthru
          _
        // Predicated region
        $region101: #{tpu_custom_call.1} parent=75 // pred_check
          %p590 = pneg %p189
        $region102: #{tpu_custom_call.1} parent=75 // pred_check_branch
          %592 = sbr.rel (%p590) target = $region104
        $region103: #{tpu_custom_call.1} parent=75 // pred_region
          %594 = dma.done [#allocation12], 256
        $region104: #{tpu_custom_call.1} parent=75 // pred_fallthru
          _
        // Predicated region
        $region105: #{tpu_custom_call.1} parent=75 // pred_check
          %p595 = pneg %p273
        $region106: #{tpu_custom_call.1} parent=75 // pred_check_branch
          %597 = sbr.rel (%p595) target = $region108
        $region107: #{tpu_custom_call.1} parent=75 // pred_region
          %599 = dma.done [#allocation15], 256
        $region108: #{tpu_custom_call.1} parent=75 // pred_fallthru
          _
        %p600 = pneg %p53
        %p601 = pneg %p50
        %p602 = pneg %p74
        %p603 = pneg %p71
        %s604 = sand.u32 %s37, 1
        %s605 = scalar_lea.sflag [#allocation4], %s604
        %s606 = sand.u32 %s87, 1
        %s607 = smul.addr %s606, 8
        %s608 = scalar_lea.vmem [#allocation8], %s607
        %p609 = pneg %p100
        %p610 = pneg %p97
        %s611 = sand.u32 %s37, 1
        %s612 = scalar_lea.sflag [#allocation4], %s611
        %s613 = sand.u32 %s113, 1
        %s614 = smul.addr %s613, 8
        %s615 = scalar_lea.vmem [#allocation9], %s614
        %p616 = pneg %p126
        %p617 = pneg %p123
        %p618 = pneg %p147
        %p619 = pneg %p144
        %p620 = pneg %p168
        %p621 = pneg %p165
        %p622 = pneg %p189
        %p623 = pneg %p186
        %p624 = pneg %p210
        %p625 = pneg %p207
        %p626 = pneg %p231
        %p627 = pneg %p228
        %p628 = pneg %p252
        %p629 = pneg %p249
        %p630 = pneg %p273
        %p631 = pneg %p270
        %p632 = pneg %p294
        %p633 = pneg %p291
        %p634 = pneg %p315
        %p635 = pneg %p312
        %p636 = pneg %p336
        %p637 = pneg %p333
        %p638 = pneg %p362
        %p639 = pneg %p359
        %s640 = sand.u32 %s349, 1
        %s641 = scalar_lea.sflag [#allocation5], %s640
        %s642 = sand.u32 %s349, 1
        %s643 = smul.addr %s642, 8
        %s644 = scalar_lea.vmem [#allocation16], %s643
        %p645 = pneg %p388
        %p646 = pneg %p385
        %s647 = sand.u32 %s375, 1
        %s648 = scalar_lea.sflag [#allocation18], %s647
        %s649 = sand.u32 %s375, 1
        %s650 = smul.addr %s649, 8
        %s651 = scalar_lea.vmem [#allocation17], %s650
        %v653 = vld [vmem:[#allocation3] sm:$0xff]
        %v654 = vld [vmem:[#allocation6] sm:$0xff]
        %v655 = vadd.f32 %v653, %v654
        %v656 = vld [vmem:[%s564] sm:$0xff]
        %v657 = vld [vmem:[%s574] sm:$0xff]
        %v658 = vadd.f32 %v656, %v657
        %v659 = vpack.c.bf16 %v655, %v655
        %v660 = vld [vmem:[#allocation10] sm:$0xf]
        %v661 = vld [vmem:[#allocation10 + $0x4] sm:$0xf]
        %v662 = vld [vmem:[#allocation10 + $0x8] sm:$0xf]
        %v663 = vld [vmem:[#allocation10 + $0xc] sm:$0xf]
        %v664 = vld [vmem:[%s7] sm:$0x1]
        %v666 = vperm.slane %v664, 0
        %v672 = vunpack.c.l.b16 %v660
        %v673 = vunpack.c.l.b16 %v661
        %v674 = vunpack.c.l.b16 %v662
        %v675 = vunpack.c.l.b16 %v663
        %v676 = vpack.c.b16 %v673, %v672
        %v677 = vpack.c.b16 %v675, %v674
        %vm680 = vcmask 261120
        %v682 = vsel %vm680, %v659, 0
        %684 = vmatpush.bf16.msra.mxu0 0
        %685 = vmatpush.bf16.msra.mxu0 0
        %686 = vmatpush.bf16.msra.mxu0 0
        %687 = vmatpush.bf16.msra.mxu0 0
        %688 = vmatpush.bf16.msra.mxu0 0
        %689 = vmatpush.bf16.msra.mxu0 0
        %690 = vmatpush.bf16.msra.mxu0 %v677
        %691 = vmatpush.bf16.msra.mxu0 %v676
        %692 = vmatmul.bf16.gmra.mxu0 %v682
        %v693 = vpop.f32.mrf.mxu0
        %v694 = vadd.f32 %v666, %v693
        %v695 = vpop.f32.mrf.mxu0
        %696 = vdwg.mxu0
        %v697 = vpack.c.bf16 %v658, %v658
        %v698 = vld [vmem:[#allocation11] sm:$0xf]
        %v699 = vld [vmem:[#allocation11 + $0x4] sm:$0xf]
        %v700 = vld [vmem:[#allocation11 + $0x8] sm:$0xf]
        %v701 = vld [vmem:[#allocation11 + $0xc] sm:$0xf]
        %v702 = vld [vmem:[%s8] sm:$0x1]
        %v704 = vperm.slane %v702, 0
        %v710 = vunpack.c.l.b16 %v698
        %v711 = vunpack.c.l.b16 %v699
        %v712 = vunpack.c.l.b16 %v700
        %v713 = vunpack.c.l.b16 %v701
        %v714 = vpack.c.b16 %v711, %v710
        %v715 = vpack.c.b16 %v713, %v712
        %v719 = vsel %vm680, %v697, 0
        %721 = vmatpush.bf16.msra.mxu0 0
        %722 = vmatpush.bf16.msra.mxu0 0
        %723 = vmatpush.bf16.msra.mxu0 0
        %724 = vmatpush.bf16.msra.mxu0 0
        %725 = vmatpush.bf16.msra.mxu0 0
        %726 = vmatpush.bf16.msra.mxu0 0
        %727 = vmatpush.bf16.msra.mxu0 %v715
        %728 = vmatpush.bf16.msra.mxu0 %v714
        %729 = vmatmul.bf16.gmra.mxu0 %v719
        %v730 = vpop.f32.mrf.mxu0
        %v731 = vadd.f32 %v704, %v730
        %v732 = vpop.f32.mrf.mxu0
        %733 = vdwg.mxu0
        %v734 = vpack.c.bf16 %v656, %v656
        %v735 = vld [vmem:[#allocation13] sm:$0xf]
        %v736 = vld [vmem:[#allocation13 + $0x4] sm:$0xf]
        %v737 = vld [vmem:[#allocation13 + $0x8] sm:$0xf]
        %v738 = vld [vmem:[#allocation13 + $0xc] sm:$0xf]
        %v739 = vld [vmem:[%s9] sm:$0x1]
        %v741 = vperm.slane %v739, 0
        %v747 = vunpack.c.l.b16 %v735
        %v748 = vunpack.c.l.b16 %v736
        %v749 = vunpack.c.l.b16 %v737
        %v750 = vunpack.c.l.b16 %v738
        %v751 = vpack.c.b16 %v748, %v747
        %v752 = vpack.c.b16 %v750, %v749
        %v756 = vsel %vm680, %v734, 0
        %758 = vmatpush.bf16.msra.mxu0 0
        %759 = vmatpush.bf16.msra.mxu0 0
        %760 = vmatpush.bf16.msra.mxu0 0
        %761 = vmatpush.bf16.msra.mxu0 0
        %762 = vmatpush.bf16.msra.mxu0 0
        %763 = vmatpush.bf16.msra.mxu0 0
        %764 = vmatpush.bf16.msra.mxu0 %v752
        %765 = vmatpush.bf16.msra.mxu0 %v751
        %766 = vmatmul.bf16.gmra.mxu0 %v756
        %v767 = vpop.f32.mrf.mxu0
        %v768 = vadd.f32 %v741, %v767
        %v769 = vpop.f32.mrf.mxu0
        %770 = vdwg.mxu0
        %v771 = vpack.c.bf16 %v694, %v694
        %773 = vrot.lane.b32.xlu0 %v771, 120
        %v774 = vpop.permute.xlu0 %773
        %775 = vrot.lane.b32.xlu0 %v771, 112
        %v776 = vpop.permute.xlu0 %775
        %777 = vrot.lane.b32.xlu0 %v771, 104
        %v778 = vpop.permute.xlu0 %777
        %v779 = vpack.c.bf16 %v731, %v731
        %781 = vrot.lane.b32.xlu0 %v779, 120
        %v782 = vpop.permute.xlu0 %781
        %783 = vrot.lane.b32.xlu0 %v779, 112
        %v784 = vpop.permute.xlu0 %783
        %785 = vrot.lane.b32.xlu0 %v779, 104
        %v786 = vpop.permute.xlu0 %785
        %v787 = vpack.c.bf16 %v768, %v768
        %789 = vrot.lane.b32.xlu0 %v787, 120
        %v790 = vpop.permute.xlu0 %789
        %791 = vrot.lane.b32.xlu0 %v787, 112
        %v792 = vpop.permute.xlu0 %791
        %793 = vrot.lane.b32.xlu0 %v787, 104
        %v794 = vpop.permute.xlu0 %793
        %vm795 = vcmask 64512
        %v797 = vsel %vm795, %v771, 0
        %v800 = vsel %vm795, %v779, 0
        %802 = vmatpush.bf16.xpose.msra.mxu0 0
        %803 = vmatpush.bf16.xpose.msra.mxu0 0
        %804 = vmatpush.bf16.xpose.msra.mxu0 0
        %805 = vmatpush.bf16.xpose.msra.mxu0 0
        %806 = vmatpush.bf16.xpose.msra.mxu0 0
        %807 = vmatpush.bf16.xpose.msra.mxu0 0
        %808 = vmatpush.bf16.xpose.msra.mxu0 0
        %809 = vmatpush.bf16.xpose.msra.mxu0 %v800
        %810 = vmatmul.bf16.gmra.mxu0 %v797
        %v811 = vpop.f32.mrf.mxu0
        %v812 = vadd.f32 0.0, %v811
        %v813 = vpop.f32.mrf.mxu0
        %814 = vdwg.mxu0
        %v816 = vsel %vm795, %v774, 0
        %v819 = vsel %vm795, %v782, 0
        %821 = vmatpush.bf16.xpose.msra.mxu0 0
        %822 = vmatpush.bf16.xpose.msra.mxu0 0
        %823 = vmatpush.bf16.xpose.msra.mxu0 0
        %824 = vmatpush.bf16.xpose.msra.mxu0 0
        %825 = vmatpush.bf16.xpose.msra.mxu0 0
        %826 = vmatpush.bf16.xpose.msra.mxu0 0
        %827 = vmatpush.bf16.xpose.msra.mxu0 0
        %828 = vmatpush.bf16.xpose.msra.mxu0 %v819
        %829 = vmatmul.bf16.gmra.mxu0 %v816
        %v830 = vpop.f32.mrf.mxu0
        %v831 = vadd.f32 0.0, %v830
        %v832 = vpop.f32.mrf.mxu0
        %833 = vdwg.mxu0
        %v835 = vsel %vm795, %v776, 0
        %v838 = vsel %vm795, %v784, 0
        %840 = vmatpush.bf16.xpose.msra.mxu0 0
        %841 = vmatpush.bf16.xpose.msra.mxu0 0
        %842 = vmatpush.bf16.xpose.msra.mxu0 0
        %843 = vmatpush.bf16.xpose.msra.mxu0 0
        %844 = vmatpush.bf16.xpose.msra.mxu0 0
        %845 = vmatpush.bf16.xpose.msra.mxu0 0
        %846 = vmatpush.bf16.xpose.msra.mxu0 0
        %847 = vmatpush.bf16.xpose.msra.mxu0 %v838
        %848 = vmatmul.bf16.gmra.mxu0 %v835
        %v849 = vpop.f32.mrf.mxu0
        %v850 = vadd.f32 0.0, %v849
        %v851 = vpop.f32.mrf.mxu0
        %852 = vdwg.mxu0
        %v854 = vsel %vm795, %v778, 0
        %v857 = vsel %vm795, %v786, 0
        %859 = vmatpush.bf16.xpose.msra.mxu0 0
        %860 = vmatpush.bf16.xpose.msra.mxu0 0
        %861 = vmatpush.bf16.xpose.msra.mxu0 0
        %862 = vmatpush.bf16.xpose.msra.mxu0 0
        %863 = vmatpush.bf16.xpose.msra.mxu0 0
        %864 = vmatpush.bf16.xpose.msra.mxu0 0
        %865 = vmatpush.bf16.xpose.msra.mxu0 0
        %866 = vmatpush.bf16.xpose.msra.mxu0 %v857
        %867 = vmatmul.bf16.gmra.mxu0 %v854
        %v868 = vpop.f32.mrf.mxu0
        %v869 = vadd.f32 0.0, %v868
        %v870 = vpop.f32.mrf.mxu0
        %871 = vdwg.mxu0
        %v872 = vsel %vm795, %v812, -inf
        %873 = vmax.xlane.f32.xlu0 %v872
        %v874 = vpop.xlane.xlu0 %873
        %v875 = vsel %vm795, %v831, -inf
        %876 = vmax.xlane.f32.xlu0 %v875
        %v877 = vpop.xlane.xlu0 %876
        %v878 = vsel %vm795, %v850, -inf
        %879 = vmax.xlane.f32.xlu0 %v878
        %v880 = vpop.xlane.xlu0 %879
        %v881 = vsel %vm795, %v869, -inf
        %882 = vmax.xlane.f32.xlu0 %v881
        %v883 = vpop.xlane.xlu0 %882
        %v884 = vsub.f32 %v812, %v874
        %v885 = vsub.f32 %v831, %v877
        %v886 = vsub.f32 %v850, %v880
        %v887 = vsub.f32 %v869, %v883
        %v888 = vmul.f32 %v884, 1.442695
        %v889 = vpow.pop %v888
        %v890 = vmul.f32 %v885, 1.442695
        %v891 = vpow.pop %v890
        %v892 = vmul.f32 %v886, 1.442695
        %v893 = vpow.pop %v892
        %v894 = vmul.f32 %v887, 1.442695
        %v895 = vpow.pop %v894
        %v896 = vsel %vm795, %v889, 0.0
        %897 = vadd.xlane.f32.xlu0 %v896
        %v898 = vpop.xlane.xlu0 %897
        %v899 = vsel %vm795, %v891, 0.0
        %900 = vadd.xlane.f32.xlu0 %v899
        %v901 = vpop.xlane.xlu0 %900
        %v902 = vsel %vm795, %v893, 0.0
        %903 = vadd.xlane.f32.xlu0 %v902
        %v904 = vpop.xlane.xlu0 %903
        %v905 = vsel %vm795, %v895, 0.0
        %906 = vadd.xlane.f32.xlu0 %v905
        %v907 = vpop.xlane.xlu0 %906
        %v908 = vrcp.pop %v898
        %v909 = vmul.f32 %v898, %v908
        %v910 = vsub.f32 1.0, %v909
        %v911 = vmul.f32 %v908, %v910
        %v912 = vadd.f32 %v908, %v911
        %vm913 = vweird.f32 %v898
        %vm914 = vweird.f32 %v908
        %vm915 = vmor %vm913, %vm914
        %v916 = vsel %vm915, %v908, %v912
        %v917 = vand.u32 2147483647, %v898
        %vm918 = vcmp.eq.f32.partialorder %v917, 8.507059e+37
        %v919 = vand.u32 %v898, 2147483648
        %v920 = vor.u32 1.1754944e-38, %v919
        %v921 = vsel %vm918, %v920, %v916
        %v922 = vmul.f32 1.0, %v921
        %v923 = vrcp.pop %v901
        %v924 = vmul.f32 %v901, %v923
        %v925 = vsub.f32 1.0, %v924
        %v926 = vmul.f32 %v923, %v925
        %v927 = vadd.f32 %v923, %v926
        %vm928 = vweird.f32 %v901
        %vm929 = vweird.f32 %v923
        %vm930 = vmor %vm928, %vm929
        %v931 = vsel %vm930, %v923, %v927
        %v932 = vand.u32 2147483647, %v901
        %vm933 = vcmp.eq.f32.partialorder %v932, 8.507059e+37
        %v934 = vand.u32 %v901, 2147483648
        %v935 = vor.u32 1.1754944e-38, %v934
        %v936 = vsel %vm933, %v935, %v931
        %v937 = vmul.f32 1.0, %v936
        %v938 = vrcp.pop %v904
        %v939 = vmul.f32 %v904, %v938
        %v940 = vsub.f32 1.0, %v939
        %v941 = vmul.f32 %v938, %v940
        %v942 = vadd.f32 %v938, %v941
        %vm943 = vweird.f32 %v904
        %vm944 = vweird.f32 %v938
        %vm945 = vmor %vm943, %vm944
        %v946 = vsel %vm945, %v938, %v942
        %v947 = vand.u32 2147483647, %v904
        %vm948 = vcmp.eq.f32.partialorder %v947, 8.507059e+37
        %v949 = vand.u32 %v904, 2147483648
        %v950 = vor.u32 1.1754944e-38, %v949
        %v951 = vsel %vm948, %v950, %v946
        %v952 = vmul.f32 1.0, %v951
        %v953 = vrcp.pop %v907
        %v954 = vmul.f32 %v907, %v953
        %v955 = vsub.f32 1.0, %v954
        %v956 = vmul.f32 %v953, %v955
        %v957 = vadd.f32 %v953, %v956
        %vm958 = vweird.f32 %v907
        %vm959 = vweird.f32 %v953
        %vm960 = vmor %vm958, %vm959
        %v961 = vsel %vm960, %v953, %v957
        %v962 = vand.u32 2147483647, %v907
        %vm963 = vcmp.eq.f32.partialorder %v962, 8.507059e+37
        %v964 = vand.u32 %v907, 2147483648
        %v965 = vor.u32 1.1754944e-38, %v964
        %v966 = vsel %vm963, %v965, %v961
        %v967 = vmul.f32 1.0, %v966
        %v968 = vmul.f32 %v889, %v922
        %v969 = vmul.f32 %v891, %v937
        %v970 = vmul.f32 %v893, %v952
        %v971 = vmul.f32 %v895, %v967
        %v972 = vsel %vm795, %v968, 0.0
        %v973 = vsel %vm795, %v969, 0.0
        %v974 = vadd.f32 %v972, %v973
        %v975 = vsel %vm795, %v970, 0.0
        %v976 = vadd.f32 %v974, %v975
        %v977 = vsel %vm795, %v971, 0.0
        %v978 = vadd.f32 %v976, %v977
        %v979 = vmul.f32 %v978, 0.25
        %v980 = vsel %vm795, %v979, 0.0
        %981 = vst [vmem:[%s651] sm:$0xff] %v980
        %v982 = vpack.c.bf16 %v968, %v968
        %v983 = vpack.c.bf16 %v969, %v969
        %v984 = vpack.c.bf16 %v970, %v970
        %v985 = vpack.c.bf16 %v971, %v971
        %v987 = vsel %vm795, %v982, 0
        %vm989 = vcmask 1043456
        %v991 = vsel %vm989, %v787, 0
        %993 = vmatpush.bf16.msra.mxu0 0
        %994 = vmatpush.bf16.msra.mxu0 0
        %995 = vmatpush.bf16.msra.mxu0 0
        %996 = vmatpush.bf16.msra.mxu0 0
        %997 = vmatpush.bf16.msra.mxu0 0
        %998 = vmatpush.bf16.msra.mxu0 0
        %999 = vmatpush.bf16.msra.mxu0 0
        %1000 = vmatpush.bf16.msra.mxu0 %v991
        %1001 = vmatmul.bf16.gmra.mxu0 %v987
        %v1002 = vpop.f32.mrf.mxu0
        %v1003 = vadd.f32 0.0, %v1002
        %v1004 = vpop.f32.mrf.mxu0
        %1005 = vdwg.mxu0
        %v1007 = vsel %vm795, %v983, 0
        %v1010 = vsel %vm989, %v790, 0
        %1012 = vmatpush.bf16.msra.mxu0 0
        %1013 = vmatpush.bf16.msra.mxu0 0
        %1014 = vmatpush.bf16.msra.mxu0 0
        %1015 = vmatpush.bf16.msra.mxu0 0
        %1016 = vmatpush.bf16.msra.mxu0 0
        %1017 = vmatpush.bf16.msra.mxu0 0
        %1018 = vmatpush.bf16.msra.mxu0 0
        %1019 = vmatpush.bf16.msra.mxu0 %v1010
        %1020 = vmatmul.bf16.gmra.mxu0 %v1007
        %v1021 = vpop.f32.mrf.mxu0
        %v1022 = vadd.f32 0.0, %v1021
        %v1023 = vpop.f32.mrf.mxu0
        %1024 = vdwg.mxu0
        %v1026 = vsel %vm795, %v984, 0
        %v1029 = vsel %vm989, %v792, 0
        %1031 = vmatpush.bf16.msra.mxu0 0
        %1032 = vmatpush.bf16.msra.mxu0 0
        %1033 = vmatpush.bf16.msra.mxu0 0
        %1034 = vmatpush.bf16.msra.mxu0 0
        %1035 = vmatpush.bf16.msra.mxu0 0
        %1036 = vmatpush.bf16.msra.mxu0 0
        %1037 = vmatpush.bf16.msra.mxu0 0
        %1038 = vmatpush.bf16.msra.mxu0 %v1029
        %1039 = vmatmul.bf16.gmra.mxu0 %v1026
        %v1040 = vpop.f32.mrf.mxu0
        %v1041 = vadd.f32 0.0, %v1040
        %v1042 = vpop.f32.mrf.mxu0
        %1043 = vdwg.mxu0
        %v1045 = vsel %vm795, %v985, 0
        %v1048 = vsel %vm989, %v794, 0
        %1050 = vmatpush.bf16.msra.mxu0 0
        %1051 = vmatpush.bf16.msra.mxu0 0
        %1052 = vmatpush.bf16.msra.mxu0 0
        %1053 = vmatpush.bf16.msra.mxu0 0
        %1054 = vmatpush.bf16.msra.mxu0 0
        %1055 = vmatpush.bf16.msra.mxu0 0
        %1056 = vmatpush.bf16.msra.mxu0 0
        %1057 = vmatpush.bf16.msra.mxu0 %v1048
        %1058 = vmatmul.bf16.gmra.mxu0 %v1045
        %v1059 = vpop.f32.mrf.mxu0
        %v1060 = vadd.f32 0.0, %v1059
        %v1061 = vpop.f32.mrf.mxu0
        %1062 = vdwg.mxu0
        %1063 = vst.msk [vmem:[#allocation2] sm:$0xff] %vm795, %v1003
        %1065 = vrot.lane.b32.xlu0 %v1022, 8
        %v1066 = vpop.permute.xlu0 %1065
        %vm1068 = vcmask 130112
        %1069 = vst.msk [vmem:[#allocation2] sm:$0xff] %vm1068, %v1066
        %1071 = vrot.lane.b32.xlu0 %v1041, 16
        %v1072 = vpop.permute.xlu0 %1071
        %vm1074 = vcmask 195712
        %1075 = vst.msk [vmem:[#allocation2] sm:$0xff] %vm1074, %v1072
        %1077 = vrot.lane.b32.xlu0 %v1060, 24
        %v1078 = vpop.permute.xlu0 %1077
        %vm1080 = vcmask 261312
        %1081 = vst.msk [vmem:[#allocation2] sm:$0xff] %vm1080, %v1078
        %v1082 = vld [vmem:[#allocation2] sm:$0xff]
        %v1083 = vpack.c.bf16 %v1082, %v1082
        %v1084 = vld [vmem:[#allocation14] sm:$0xf]
        %v1085 = vld [vmem:[#allocation14 + $0x4] sm:$0xf]
        %v1086 = vld [vmem:[#allocation14 + $0x8] sm:$0xf]
        %v1087 = vld [vmem:[#allocation14 + $0xc] sm:$0xf]
        %v1088 = vld [vmem:[%s11] sm:$0x1]
        %v1090 = vperm.slane %v1088, 0
        %v1096 = vunpack.c.l.b16 %v1084
        %v1097 = vunpack.c.l.b16 %v1085
        %v1098 = vunpack.c.l.b16 %v1086
        %v1099 = vunpack.c.l.b16 %v1087
        %v1100 = vpack.c.b16 %v1097, %v1096
        %v1101 = vpack.c.b16 %v1099, %v1098
        %v1105 = vsel %vm680, %v1083, 0
        %1107 = vmatpush.bf16.msra.mxu0 0
        %1108 = vmatpush.bf16.msra.mxu0 0
        %1109 = vmatpush.bf16.msra.mxu0 0
        %1110 = vmatpush.bf16.msra.mxu0 0
        %1111 = vmatpush.bf16.msra.mxu0 0
        %1112 = vmatpush.bf16.msra.mxu0 0
        %1113 = vmatpush.bf16.msra.mxu0 %v1101
        %1114 = vmatpush.bf16.msra.mxu0 %v1100
        %1115 = vmatmul.bf16.gmra.mxu0 %v1105
        %v1116 = vpop.f32.mrf.mxu0
        %v1117 = vadd.f32 %v1090, %v1116
        %v1118 = vpop.f32.mrf.mxu0
        %1119 = vdwg.mxu0
        %v1120 = vadd.f32 %v653, %v1117
        %v1121 = vsel %vm680, %v1120, 0.0
        %1122 = vadd.xlane.f32.xlu0 %v1121
        %v1123 = vpop.xlane.xlu0 %1122
        %v1124 = vrcp.pop 32.0
        %v1125 = vmul.f32 32.0, %v1124
        %v1126 = vsub.f32 1.0, %v1125
        %v1127 = vmul.f32 %v1124, %v1126
        %v1128 = vadd.f32 %v1124, %v1127
        %vm1129 = vweird.f32 %v1124
        %v1130 = vsel %vm1129, %v1124, %v1128
        %v1131 = vmul.f32 %v1123, %v1130
        %v1132 = vsub.f32 %v1120, %v1131
        %v1133 = vmul.f32 %v1132, %v1132
        %v1134 = vsel %vm680, %v1133, 0.0
        %1135 = vadd.xlane.f32.xlu0 %v1134
        %v1136 = vpop.xlane.xlu0 %1135
        %v1137 = vmul.f32 %v1136, %v1130
        %v1138 = vadd.f32 %v1137, 1e-05
        %v1139 = vrsqrt.pop %v1138
        %v1140 = vmul.f32 %v1139, %v1138
        %v1141 = vmul.f32 %v1140, %v1139
        %v1142 = vmul.f32 0.5, %v1141
        %v1143 = vsub.f32 1.5, %v1142
        %v1144 = vmul.f32 %v1139, %v1143
        %vm1145 = vweird.f32 %v1138
        %vm1146 = vweird.f32 %v1139
        %vm1147 = vmor %vm1145, %vm1146
        %v1148 = vsel %vm1147, %v1139, %v1144
        %v1149 = vmul.f32 %v1132, %v1148
        %v1150 = vld [vmem:[%s12] sm:$0x1]
        %v1152 = vperm.slane %v1150, 0
        %v1154 = vmul.f32 %v1149, %v1152
        %v1155 = vld [vmem:[%s13] sm:$0x1]
        %v1157 = vperm.slane %v1155, 0
        %v1159 = vadd.f32 %v1154, %v1157
        %1160 = vst.msk [vmem:[%s644] sm:$0xff] %vm680, %v1159
        %s1161 = sand.u32 %s349, 1
        %s1162 = scalar_lea.sflag [#allocation5], %s1161
        %s1163 = sand.u32 %s349, 1
        %s1164 = smul.addr %s1163, 8
        %s1165 = scalar_lea.vmem [#allocation16], %s1164
        %s1166 = sand.u32 %s375, 1
        %s1167 = scalar_lea.sflag [#allocation18], %s1166
        %s1168 = sand.u32 %s375, 1
        %s1169 = smul.addr %s1168, 8
        %s1170 = scalar_lea.vmem [#allocation17], %s1169
        // Predicated region
        $region109: #{tpu_custom_call.1} parent=75 // pred_check
          %p1171 = pneg %p359
        $region110: #{tpu_custom_call.1} parent=75 // pred_check_branch
          %1173 = sbr.rel (%p1171) target = $region112
        $region111: #{tpu_custom_call.1} parent=75 // pred_region
          %1175 = vsyncadd %s1162, 0
          %s1176 = smul.addr %s37, 8
          %s1177 = scalar_lea.hbm %s14, %s1176
          %s1179 = sshll.u32 %s1165, 4
          %s1180 = int_to_ptr.vmem [resolvable:$true] %s1179
          %s1181 = sshll.u32 %s1177, 4
          %s1182 = int_to_ptr.hbm [resolvable:$true] %s1181
          %1184 = dma.vmem_to_hbm [thread:$0]  %s1180, 128, %s1182, %s1162
        $region112: #{tpu_custom_call.1} parent=75 // pred_fallthru
          _
        // Predicated region
        $region113: #{tpu_custom_call.1} parent=75 // pred_check
          %p1185 = pneg %p385
        $region114: #{tpu_custom_call.1} parent=75 // pred_check_branch
          %1187 = sbr.rel (%p1185) target = $region116
        $region115: #{tpu_custom_call.1} parent=75 // pred_region
          %1189 = vsyncadd %s1167, 0
          %s1190 = smul.addr %s37, 8
          %s1191 = scalar_lea.hbm %s15, %s1190
          %s1193 = sshll.u32 %s1170, 4
          %s1194 = int_to_ptr.vmem [resolvable:$true] %s1193
          %s1195 = sshll.u32 %s1191, 4
          %s1196 = int_to_ptr.hbm [resolvable:$true] %s1195
          %1198 = dma.vmem_to_hbm [thread:$0]  %s1194, 128, %s1196, %s1167
        $region116: #{tpu_custom_call.1} parent=75 // pred_fallthru
          _
      $region76: #{tpu_custom_call.1} parent=5 // pred_fallthru
        _
      %p1199 = scmp.le.s32.totalorder 2, %s32
      // Predicated region
      $region117: #{tpu_custom_call.1} parent=5 // pred_check
        %p1200 = pneg %p1199
      $region118: #{tpu_custom_call.1} parent=5 // pred_check_branch
        %1202 = sbr.rel (%p1200) target = $region120
      $region119: #{tpu_custom_call.1} parent=5 // pred_region
        %s1203 = ssub.s32 %s32, 2
        // Predicated region
        $region121: #{tpu_custom_call.1} parent=119 // pred_check
          %p1204 = pneg %p365
        $region122: #{tpu_custom_call.1} parent=119 // pred_check_branch
          %1206 = sbr.rel (%p1204) target = $region124
        $region123: #{tpu_custom_call.1} parent=119 // pred_region
          %s1207 = sand.u32 %s350, 1
          %s1208 = scalar_lea.sflag [#allocation5], %s1207
          %s1209 = sand.u32 %s350, 1
          %s1210 = smul.addr %s1209, 8
          %s1211 = scalar_lea.vmem [#allocation16], %s1210
          %1213 = dma.done %s1208, 128
        $region124: #{tpu_custom_call.1} parent=119 // pred_fallthru
          _
        // Predicated region
        $region125: #{tpu_custom_call.1} parent=119 // pred_check
          %p1214 = pneg %p391
        $region126: #{tpu_custom_call.1} parent=119 // pred_check_branch
          %1216 = sbr.rel (%p1214) target = $region128
        $region127: #{tpu_custom_call.1} parent=119 // pred_region
          %s1217 = sand.u32 %s376, 1
          %s1218 = scalar_lea.sflag [#allocation18], %s1217
          %s1219 = sand.u32 %s376, 1
          %s1220 = smul.addr %s1219, 8
          %s1221 = scalar_lea.vmem [#allocation17], %s1220
          %1223 = dma.done %s1218, 128
        $region128: #{tpu_custom_call.1} parent=119 // pred_fallthru
          _
      $region120: #{tpu_custom_call.1} parent=5 // pred_fallthru
        _
    $region6: #{tpu_custom_call.1} parent=1 // loop_footer
      %s36 = sadd.s32 1, %s32
    $region7: #{tpu_custom_call.1} parent=1 // loop_footer_branch
      %31 = sbr.rel target = $region3
    $region8: #{tpu_custom_call.1} parent=1 // loop_exit
      _
    %1224 = vsyncpa [#allocation4], 1
    %s1225 = scalar_lea.sflag [#allocation4], 1
    %1226 = vsyncpa %s1225, 1
    %1227 = vsyncpa [#allocation7], 1
    %1228 = vsyncpa [#allocation12], 1
    %1229 = vsyncpa [#allocation15], 1
    %1230 = vsyncpa [#allocation5], 1
    %s1231 = scalar_lea.sflag [#allocation5], 1
    %1232 = vsyncpa %s1231, 1
    %1233 = vsyncpa [#allocation18], 1
    %s1234 = scalar_lea.sflag [#allocation18], 1
    %1235 = vsyncpa %s1234, 1

</llo_original>
